<compile_context>
chip_gen: v7x
topology: tpu7x:2x2x1
jax: 0.10.0
libtpu: 0.0.40
codegen_flags: <defaults>
</compile_context>

<pallas_src>
import functools
import math

import jax
import jax.numpy as jnp
from jax import lax
from jax.experimental import pallas as pl
from jax.experimental.pallas import tpu as pltpu


LANE = 128


@functools.lru_cache(maxsize=None)
def _vmem_limit_bytes():
    # v5e/v6e: 128 MiB physical VMEM -> 64 MiB scoped lifts mem-bound kernels
    # toward the HBM roofline.  v7x: only 64 MiB per TensorCore -> stay at
    # 48 MiB (also the safe default when the query is unavailable).
    try:
        cap = pltpu.get_tpu_info().vmem_capacity_bytes
    except Exception:
        cap = 0
    return 64 * 1024 * 1024 if cap >= 100 * 1024 * 1024 else 48 * 1024 * 1024


def _compiler_params(dimension_semantics):
    return pltpu.CompilerParams(
        dimension_semantics=dimension_semantics,
        vmem_limit_bytes=_vmem_limit_bytes(),
    )


def _row_tile(m):
    """Largest row tile (<=512) that evenly divides m; m itself when small."""
    if m <= 512:
        return m
    for t in (512, 256, 128, 64, 32, 16, 8):
        if m % t == 0:
            return t
    return m


def _attn_tile(t, cap):
    """Largest kv/q tile (<=cap) dividing the sequence length."""
    if t <= cap:
        return t
    for c in (cap, 256, 128, 64, 32, 16, 8):
        if t % c == 0:
            return c
    return t


# ----------------------------- Pallas kernels -----------------------------

def linear_kernel(x_ref, w_ref, b_ref, o_ref, *, activation):
    # bf16 x bf16 matmul with f32 accumulation; epilogue in f32.
    y = jnp.dot(x_ref[...], w_ref[...], preferred_element_type=jnp.float32)
    y = y + b_ref[...]
    if activation == "gelu":
        # TODO(synk): BERT uses exact (erf) GELU; tanh approximation used here.
        y = jax.nn.gelu(y, approximate=True)
    o_ref[...] = y.astype(o_ref.dtype)


def linear(x, w, b, activation=None, out_dtype=None):
    M, K = x.shape
    N = w.shape[1]
    tm = _row_tile(M)
    out_dtype = out_dtype or x.dtype
    kern = functools.partial(linear_kernel, activation=activation)
    return pl.pallas_call(
        kern,
        out_shape=jax.ShapeDtypeStruct((M, N), out_dtype),
        grid=(M // tm,),
        in_specs=[
            pl.BlockSpec((tm, K), lambda i: (i, 0)),
            pl.BlockSpec((K, N), lambda i: (0, 0)),
            pl.BlockSpec((1, N), lambda i: (0, 0)),
        ],
        out_specs=pl.BlockSpec((tm, N), lambda i: (i, 0)),
        compiler_params=_compiler_params(("parallel",)),
    )(x, w, b.reshape(1, N))


def layernorm_kernel(x_ref, g_ref, b_ref, o_ref):
    x = x_ref[...].astype(jnp.float32)
    mean = jnp.mean(x, axis=-1, keepdims=True)
    var = jnp.mean((x - mean) ** 2, axis=-1, keepdims=True)
    y = (x - mean) * lax.rsqrt(var + 1e-12)
    o_ref[...] = (y * g_ref[...] + b_ref[...]).astype(o_ref.dtype)


def layernorm(x, gamma, beta, out_dtype):
    M, H = x.shape
    tm = _row_tile(M)
    return pl.pallas_call(
        layernorm_kernel,
        out_shape=jax.ShapeDtypeStruct((M, H), out_dtype),
        grid=(M // tm,),
        in_specs=[
            pl.BlockSpec((tm, H), lambda i: (i, 0)),
            pl.BlockSpec((1, H), lambda i: (0, 0)),
            pl.BlockSpec((1, H), lambda i: (0, 0)),
        ],
        out_specs=pl.BlockSpec((tm, H), lambda i: (i, 0)),
        compiler_params=_compiler_params(("parallel",)),
    )(x, gamma.reshape(1, H), beta.reshape(1, H))


def linear_add_ln_kernel(x_ref, w_ref, b_ref, r_ref, g_ref, be_ref, o_ref):
    # Fused: y = LayerNorm(x @ W + b + residual); matmul bf16, epilogue f32.
    y = jnp.dot(x_ref[...], w_ref[...], preferred_element_type=jnp.float32)
    y = y + b_ref[...] + r_ref[...].astype(jnp.float32)
    mean = jnp.mean(y, axis=-1, keepdims=True)
    var = jnp.mean((y - mean) ** 2, axis=-1, keepdims=True)
    y = (y - mean) * lax.rsqrt(var + 1e-12)
    o_ref[...] = (y * g_ref[...] + be_ref[...]).astype(o_ref.dtype)


def linear_add_layernorm(x, w, b, residual, gamma, beta):
    M, K = x.shape
    N = w.shape[1]
    tm = _row_tile(M)
    return pl.pallas_call(
        linear_add_ln_kernel,
        out_shape=jax.ShapeDtypeStruct((M, N), x.dtype),
        grid=(M // tm,),
        in_specs=[
            pl.BlockSpec((tm, K), lambda i: (i, 0)),
            pl.BlockSpec((K, N), lambda i: (0, 0)),
            pl.BlockSpec((1, N), lambda i: (0, 0)),
            pl.BlockSpec((tm, N), lambda i: (i, 0)),
            pl.BlockSpec((1, N), lambda i: (0, 0)),
            pl.BlockSpec((1, N), lambda i: (0, 0)),
        ],
        out_specs=pl.BlockSpec((tm, N), lambda i: (i, 0)),
        compiler_params=_compiler_params(("parallel",)),
    )(x, w, b.reshape(1, N), residual, gamma.reshape(1, N), beta.reshape(1, N))


def flash_attn_kernel(q_ref, k_ref, v_ref, mask_ref, o_ref, m_sc, l_sc, acc_sc):
    # q_ref: [1,1,bq,hd]  k_ref/v_ref: [1,1,bk,hd]  mask_ref: [1,1,bk] (additive)
    # Online softmax over kv tiles; 1/sqrt(hd) already folded into Wq at init.
    ki = pl.program_id(3)

    @pl.when(ki == 0)
    def _():
        m_sc[...] = jnp.full_like(m_sc, -jnp.inf)
        l_sc[...] = jnp.zeros_like(l_sc)
        acc_sc[...] = jnp.zeros_like(acc_sc)

    q = q_ref[0, 0]                                   # [bq, hd] bf16
    k = k_ref[0, 0]                                   # [bk, hd] bf16
    v = v_ref[0, 0]                                   # [bk, hd] bf16
    s = jnp.dot(q, k.T, preferred_element_type=jnp.float32)    # [bq, bk] f32
    s = s + mask_ref[0]                               # broadcast [1, bk]

    m_prev = m_sc[...]
    m_new = jnp.maximum(m_prev, jnp.max(s, axis=-1, keepdims=True))
    alpha = jnp.exp(m_prev - m_new)
    p = jnp.exp(s - m_new)                            # unnormalized probs
    l_sc[...] = alpha * l_sc[...] + jnp.sum(p, axis=-1, keepdims=True)
    acc_sc[...] = alpha * acc_sc[...] + jnp.dot(
        p.astype(v.dtype), v, preferred_element_type=jnp.float32)
    m_sc[...] = m_new

    @pl.when(ki == pl.num_programs(3) - 1)
    def _():
        # Deferred normalization: divide the [bq, hd] accumulator, not [bq, bk].
        inv = pl.reciprocal(l_sc[...], approx=True)
        o_ref[0, 0] = (acc_sc[...] * inv).astype(o_ref.dtype)


def flash_attention(q, k, v, add_mask):
    # q, k, v: [B, nh, T, hd] bf16;  add_mask: [B, 1, T] f32 (0 / -1e4).
    B, nh, T, hd = q.shape
    bq = _attn_tile(T, 256)   # tall q tile amortizes the short hd contraction
    bk = _attn_tile(T, 512)
    grid = (B, nh, T // bq, T // bk)
    return pl.pallas_call(
        flash_attn_kernel,
        out_shape=jax.ShapeDtypeStruct((B, nh, T, hd), q.dtype),
        grid=grid,
        in_specs=[
            pl.BlockSpec((1, 1, bq, hd), lambda b, h, qi, ki: (b, h, qi, 0)),
            pl.BlockSpec((1, 1, bk, hd), lambda b, h, qi, ki: (b, h, ki, 0)),
            pl.BlockSpec((1, 1, bk, hd), lambda b, h, qi, ki: (b, h, ki, 0)),
            pl.BlockSpec((1, 1, bk), lambda b, h, qi, ki: (b, 0, ki)),
        ],
        out_specs=pl.BlockSpec((1, 1, bq, hd), lambda b, h, qi, ki: (b, h, qi, 0)),
        scratch_shapes=[
            pltpu.VMEM((bq, 1), jnp.float32),    # running max
            pltpu.VMEM((bq, 1), jnp.float32),    # running denom
            pltpu.VMEM((bq, hd), jnp.float32),   # running context
        ],
        compiler_params=_compiler_params(
            ("parallel", "parallel", "parallel", "arbitrary")),
    )(q, k, v, add_mask)


def pooler_fc1_kernel(cls_ref, pw_ref, pb_ref, fw_ref, fb_ref, o_ref):
    # pooled = tanh(cls @ W_pool + b_pool); logits = pooled @ W_fc1 + b_fc1
    x = cls_ref[0]                                          # [1, H] bf16
    pooled = jnp.tanh(
        jnp.dot(x, pw_ref[...], preferred_element_type=jnp.float32) + pb_ref[...])
    logits = jnp.dot(pooled.astype(fw_ref.dtype), fw_ref[...],
                     preferred_element_type=jnp.float32) + fb_ref[...]
    o_ref[0] = logits


def pooler_fc1(cls, pool_w, pool_b, fc1_w_pad, fc1_b_pad, num_labels):
    # fc1 weights come pre-padded to 128 lanes from init_params (lane-dense head).
    B, H = cls.shape
    out = pl.pallas_call(
        pooler_fc1_kernel,
        out_shape=jax.ShapeDtypeStruct((B, 1, LANE), jnp.float32),
        grid=(B,),
        in_specs=[
            pl.BlockSpec((1, 1, H), lambda b: (b, 0, 0)),
            pl.BlockSpec((H, H), lambda b: (0, 0)),
            pl.BlockSpec((1, H), lambda b: (0, 0)),
            pl.BlockSpec((H, LANE), lambda b: (0, 0)),
            pl.BlockSpec((1, LANE), lambda b: (0, 0)),
        ],
        out_specs=pl.BlockSpec((1, 1, LANE), lambda b: (b, 0, 0)),
        compiler_params=_compiler_params(("parallel",)),
    )(cls.reshape(B, 1, H), pool_w, pool_b.reshape(1, H),
      fc1_w_pad, fc1_b_pad.reshape(1, LANE))
    return out[:, 0, :num_labels]


# ----------------------------- model definition ---------------------------

class Config:
    vocab_size = 100
    type_vocab_size = 2
    max_position_embeddings = 16
    hidden_size = 32          # stands in for BERT's 768 ("input_length")
    num_heads = 4
    num_layers = 2
    intermediate_size = 64
    num_labels = 2            # fc1 = nn.Linear(hidden, 2)


def init_params(key, cfg):
    wdt = jnp.bfloat16  # weights kept in bf16 for MXU-rate matmuls
    H, I = cfg.hidden_size, cfg.intermediate_size
    hd = H // cfg.num_heads
    scale = 1.0 / math.sqrt(hd)

    def normal_f32(key, shape):
        return 0.02 * jax.random.normal(key, shape, dtype=jnp.float32)

    keys = iter(jax.random.split(key, 8 + 8 * cfg.num_layers))
    params = {
        "word_emb": normal_f32(next(keys), (cfg.vocab_size, H)),
        "pos_emb": normal_f32(next(keys), (cfg.max_position_embeddings, H)),
        "type_emb": normal_f32(next(keys), (cfg.type_vocab_size, H)),
        "emb_ln_g": jnp.ones((H,), jnp.float32),
        "emb_ln_b": jnp.zeros((H,), jnp.float32),
        "pool_w": normal_f32(next(keys), (H, H)).astype(wdt),
        "pool_b": jnp.zeros((H,), jnp.float32),
        # fc1 head stored pre-padded to 128 lanes (lane-dense logits output).
        "fc1_w": jnp.pad(normal_f32(next(keys), (H, cfg.num_labels)),
                         ((0, 0), (0, LANE - cfg.num_labels))).astype(wdt),
        "fc1_b": jnp.zeros((LANE,), jnp.float32),
        "layers": [],
    }
    for _ in range(cfg.num_layers):
        # Fused Q/K/V projection: single [H, 3H] weight / [3H] bias.
        # Fold the 1/sqrt(hd) softmax scale into the Q columns (and Q bias)
        # so the attention kernel never scales the [bq, bk] score matrix.
        qkv_w = normal_f32(next(keys), (H, 3 * H))
        qkv_w = qkv_w.at[:, :H].multiply(scale)
        qkv_b = jnp.zeros((3 * H,), jnp.float32)           # Q part pre-scaled too
        params["layers"].append({
            "qkv_w": qkv_w.astype(wdt),
            "qkv_b": qkv_b,
            "o_w": normal_f32(next(keys), (H, H)).astype(wdt),
            "o_b": jnp.zeros((H,), jnp.float32),
            "attn_ln_g": jnp.ones((H,), jnp.float32),
            "attn_ln_b": jnp.zeros((H,), jnp.float32),
            "i_w": normal_f32(next(keys), (H, I)).astype(wdt),
            "i_b": jnp.zeros((I,), jnp.float32),
            "f_w": normal_f32(next(keys), (I, H)).astype(wdt),
            "f_b": jnp.zeros((H,), jnp.float32),
            "ffn_ln_g": jnp.ones((H,), jnp.float32),
            "ffn_ln_b": jnp.zeros((H,), jnp.float32),
        })
    return params


def next_sentence_classifier_forward(params, input_ids, attention_mask,
                                     token_type_ids, cfg):
    B, T = input_ids.shape
    H = cfg.hidden_size
    nh = cfg.num_heads
    hd = H // nh
    act_dtype = jnp.bfloat16

    # --- embeddings (gathers are glue, stay in JAX) ---
    pos_ids = jnp.arange(T)
    emb = (jnp.take(params["word_emb"], input_ids, axis=0)
           + jnp.take(params["pos_emb"], pos_ids, axis=0)[None, :, :]
           + jnp.take(params["type_emb"], token_type_ids, axis=0))
    x = layernorm(emb.reshape(B * T, H), params["emb_ln_g"], params["emb_ln_b"],
                  out_dtype=act_dtype)                                    # [B*T, H]

    # BERT-style additive attention mask: 0 for attended, -1e4 for padding.
    add_mask = ((1.0 - attention_mask.astype(jnp.float32)) * -10000.0)[:, None, :]

    for layer in params["layers"]:
        qkv = linear(x, layer["qkv_w"], layer["qkv_b"])                   # [B*T, 3H]
        # Head split to [3, B, nh, T, hd] so the flash kernel's BlockSpecs do the
        # per-head slicing (full-lane hd blocks; no in-kernel lane slices).
        # TODO(synk): fold this relayout (and the QKV projection) into the
        # attention pipeline via pltpu.emit_pipeline to remove the remaining
        # HBM round trip at real BERT sizes.
        qkv = qkv.reshape(B, T, 3, nh, hd).transpose(2, 0, 3, 1, 4)
        ctx = flash_attention(qkv[0], qkv[1], qkv[2], add_mask)           # [B,nh,T,hd]
        ctx = ctx.transpose(0, 2, 1, 3).reshape(B * T, H)
        x = linear_add_layernorm(ctx, layer["o_w"], layer["o_b"], x,
                                 layer["attn_ln_g"], layer["attn_ln_b"])
        inter = linear(x, layer["i_w"], layer["i_b"], activation="gelu")  # [B*T, I]
        x = linear_add_layernorm(inter, layer["f_w"], layer["f_b"], x,
                                 layer["ffn_ln_g"], layer["ffn_ln_b"])

    # --- pooler_output + fc1, fused: logits = tanh(W_pool h_CLS + b) W_fc1 + b ---
    cls = x.reshape(B, T, H)[:, 0, :]                                     # [B, H]
    logits = pooler_fc1(cls, params["pool_w"], params["pool_b"],
                        params["fc1_w"], params["fc1_b"], cfg.num_labels)
    return logits                                                         # [B, 2] f32


if __name__ == "__main__":
    cfg = Config()
    B, T = 2, 8

    key = jax.random.PRNGKey(0)
    k_params, k_ids = jax.random.split(key)

    params = init_params(k_params, cfg)
    input_ids = jax.random.randint(k_ids, (B, T), 0, cfg.vocab_size, dtype=jnp.int32)
    attention_mask = jnp.array([[1, 1, 1, 1, 1, 1, 0, 0],
                                [1, 1, 1, 1, 1, 1, 1, 1]], dtype=jnp.int32)
    token_type_ids = jnp.array([[0, 0, 0, 0, 1, 1, 1, 1],
                                [0, 0, 0, 1, 1, 1, 1, 1]], dtype=jnp.int32)

    fwd = jax.jit(
        lambda p, ii, am, tt: next_sentence_classifier_forward(p, ii, am, tt, cfg))
    logits = fwd(params, input_ids, attention_mask, token_type_ids)
    logits = jax.block_until_ready(logits)

    assert logits.shape == (B, cfg.num_labels), logits.shape
    assert logits.dtype == jnp.float32
    assert bool(jnp.all(jnp.isfinite(logits)))
    print("KERNEL_OK")
</pallas_src>

<mosaic_0001>
module attributes {stable_mosaic.version = 11 : i64} {
  func.func @linear_kernel(%arg0: i32, %arg1: memref<16x32xbf16, #tpu.memory_space<vmem>>, %arg2: memref<32x96xbf16, #tpu.memory_space<vmem>>, %arg3: memref<1x96xf32, #tpu.memory_space<vmem>>, %arg4: memref<16x96xbf16, #tpu.memory_space<vmem>>) attributes {dimension_semantics = [#tpu.dimension_semantics<parallel>], iteration_bounds = array<i64: 1>, scalar_prefetch = 0 : i64, scratch_operands = 0 : i64, tpu.core_type = #tpu.core_type<tc>, window_params = [{transform_indices = @transform_0, window_bounds = array<i64: 16, 32>}, {pipeline_mode = #tpu.pipeline_mode<synchronous>, transform_indices = @transform_1, window_bounds = array<i64: 32, 96>}, {pipeline_mode = #tpu.pipeline_mode<synchronous>, transform_indices = @transform_2, window_bounds = array<i64: 1, 96>}, {transform_indices = @transform_3, window_bounds = array<i64: 16, 96>}]} {
    %c0 = arith.constant 0 : index
    %c0_0 = arith.constant 0 : index
    %0 = vector.load %arg1[%c0, %c0_0] : memref<16x32xbf16, #tpu.memory_space<vmem>>, vector<16x32xbf16>
    %c0_1 = arith.constant 0 : index
    %c0_2 = arith.constant 0 : index
    %1 = vector.load %arg2[%c0_1, %c0_2] : memref<32x96xbf16, #tpu.memory_space<vmem>>, vector<32x96xbf16>
    %cst = arith.constant dense<0.000000e+00> : vector<16x96xf32>
    %2 = tpu.matmul %0, %1, %cst {dimension_numbers = #tpu.dot_dimension_numbers<[1], [0], [0], [1], [0, 0, 1, 1], [], []>} : vector<16x32xbf16>, vector<32x96xbf16>, vector<16x96xf32> -> vector<16x96xf32>
    %c0_3 = arith.constant 0 : index
    %c0_4 = arith.constant 0 : index
    %3 = vector.load %arg3[%c0_3, %c0_4] : memref<1x96xf32, #tpu.memory_space<vmem>>, vector<1x96xf32>
    %4 = vector.broadcast %3 : vector<1x96xf32> to vector<16x96xf32>
    %5 = arith.addf %2, %4 : vector<16x96xf32>
    %6 = arith.truncf %5 : vector<16x96xf32> to vector<16x96xbf16>
    %c0_5 = arith.constant 0 : index
    %c0_6 = arith.constant 0 : index
    %7 = vector.load %arg4[%c0_5, %c0_6] : memref<16x96xbf16, #tpu.memory_space<vmem>>, vector<16x96xbf16>
    tpu.vector_store %arg4[%c0_5, %c0_6], %6 {strides = array<i32>} : memref<16x96xbf16, #tpu.memory_space<vmem>>, vector<16x96xbf16>,
    return
  }
  func.func @transform_0(%arg0: i32) -> (i32, i32) {
    %c0_i32 = arith.constant 0 : i32
    %c0_i32_0 = arith.constant 0 : i32
    return %arg0, %c0_i32 : i32, i32
  }
  func.func @transform_1(%arg0: i32) -> (i32, i32) {
    %c0_i32 = arith.constant 0 : i32
    %c0_i32_0 = arith.constant 0 : i32
    %c0_i32_1 = arith.constant 0 : i32
    return %c0_i32, %c0_i32_0 : i32, i32
  }
  func.func @transform_2(%arg0: i32) -> (i32, i32) {
    %c0_i32 = arith.constant 0 : i32
    %c0_i32_0 = arith.constant 0 : i32
    %c0_i32_1 = arith.constant 0 : i32
    return %c0_i32, %c0_i32_0 : i32, i32
  }
  func.func @transform_3(%arg0: i32) -> (i32, i32) {
    %c0_i32 = arith.constant 0 : i32
    %c0_i32_0 = arith.constant 0 : i32
    return %arg0, %c0_i32 : i32, i32
  }
}

module attributes {stable_mosaic.version = 11 : i64} {
  func.func @layernorm_kernel(%arg0: i32, %arg1: memref<16x32xf32, #tpu.memory_space<vmem>>, %arg2: memref<1x32xf32, #tpu.memory_space<vmem>>, %arg3: memref<1x32xf32, #tpu.memory_space<vmem>>, %arg4: memref<16x32xbf16, #tpu.memory_space<vmem>>) attributes {dimension_semantics = [#tpu.dimension_semantics<parallel>], iteration_bounds = array<i64: 1>, scalar_prefetch = 0 : i64, scratch_operands = 0 : i64, tpu.core_type = #tpu.core_type<tc>, window_params = [{transform_indices = @transform_0, window_bounds = array<i64: 16, 32>}, {pipeline_mode = #tpu.pipeline_mode<synchronous>, transform_indices = @transform_1, window_bounds = array<i64: 1, 32>}, {pipeline_mode = #tpu.pipeline_mode<synchronous>, transform_indices = @transform_2, window_bounds = array<i64: 1, 32>}, {transform_indices = @transform_3, window_bounds = array<i64: 16, 32>}]} {
    %c0 = arith.constant 0 : index
    %c0_0 = arith.constant 0 : index
    %0 = vector.load %arg1[%c0, %c0_0] : memref<16x32xf32, #tpu.memory_space<vmem>>, vector<16x32xf32>
    %cst = arith.constant dense<0.000000e+00> : vector<16xf32>
    %1 = vector.multi_reduction <add>, %0, %cst [1] : vector<16x32xf32> to vector<16xf32>
    %2 = vector.shape_cast %1 : vector<16xf32> to vector<16x1xf32>
    %cst_1 = arith.constant 3.200000e+01 : f32
    %3 = vector.broadcast %cst_1 : f32 to vector<16x1xf32>
    %4 = arith.divf %2, %3 : vector<16x1xf32>
    %5 = vector.broadcast %4 : vector<16x1xf32> to vector<16x32xf32>
    %6 = arith.subf %0, %5 : vector<16x32xf32>
    %7 = arith.mulf %6, %6 : vector<16x32xf32>
    %cst_2 = arith.constant dense<0.000000e+00> : vector<16xf32>
    %8 = vector.multi_reduction <add>, %7, %cst_2 [1] : vector<16x32xf32> to vector<16xf32>
    %9 = vector.shape_cast %8 : vector<16xf32> to vector<16x1xf32>
    %cst_3 = arith.constant 3.200000e+01 : f32
    %10 = vector.broadcast %cst_3 : f32 to vector<16x1xf32>
    %11 = arith.divf %9, %10 : vector<16x1xf32>
    %12 = vector.broadcast %4 : vector<16x1xf32> to vector<16x32xf32>
    %13 = arith.subf %0, %12 : vector<16x32xf32>
    %cst_4 = arith.constant 9.99999996E-13 : f32
    %14 = vector.broadcast %cst_4 : f32 to vector<16x1xf32>
    %15 = arith.addf %11, %14 : vector<16x1xf32>
    %16 = math.rsqrt %15 : vector<16x1xf32>
    %17 = vector.broadcast %16 : vector<16x1xf32> to vector<16x32xf32>
    %18 = arith.mulf %13, %17 : vector<16x32xf32>
    %c0_5 = arith.constant 0 : index
    %c0_6 = arith.constant 0 : index
    %19 = vector.load %arg2[%c0_5, %c0_6] : memref<1x32xf32, #tpu.memory_space<vmem>>, vector<1x32xf32>
    %20 = vector.broadcast %19 : vector<1x32xf32> to vector<16x32xf32>
    %21 = arith.mulf %18, %20 : vector<16x32xf32>
    %c0_7 = arith.constant 0 : index
    %c0_8 = arith.constant 0 : index
    %22 = vector.load %arg3[%c0_7, %c0_8] : memref<1x32xf32, #tpu.memory_space<vmem>>, vector<1x32xf32>
    %23 = vector.broadcast %22 : vector<1x32xf32> to vector<16x32xf32>
    %24 = arith.addf %21, %23 : vector<16x32xf32>
    %25 = arith.truncf %24 : vector<16x32xf32> to vector<16x32xbf16>
    %c0_9 = arith.constant 0 : index
    %c0_10 = arith.constant 0 : index
    %26 = vector.load %arg4[%c0_9, %c0_10] : memref<16x32xbf16, #tpu.memory_space<vmem>>, vector<16x32xbf16>
    tpu.vector_store %arg4[%c0_9, %c0_10], %25 {strides = array<i32>} : memref<16x32xbf16, #tpu.memory_space<vmem>>, vector<16x32xbf16>,
    return
  }
  func.func @transform_0(%arg0: i32) -> (i32, i32) {
    %c0_i32 = arith.constant 0 : i32
    %c0_i32_0 = arith.constant 0 : i32
    return %arg0, %c0_i32 : i32, i32
  }
  func.func @transform_1(%arg0: i32) -> (i32, i32) {
    %c0_i32 = arith.constant 0 : i32
    %c0_i32_0 = arith.constant 0 : i32
    %c0_i32_1 = arith.constant 0 : i32
    return %c0_i32, %c0_i32_0 : i32, i32
  }
  func.func @transform_2(%arg0: i32) -> (i32, i32) {
    %c0_i32 = arith.constant 0 : i32
    %c0_i32_0 = arith.constant 0 : i32
    %c0_i32_1 = arith.constant 0 : i32
    return %c0_i32, %c0_i32_0 : i32, i32
  }
  func.func @transform_3(%arg0: i32) -> (i32, i32) {
    %c0_i32 = arith.constant 0 : i32
    %c0_i32_0 = arith.constant 0 : i32
    return %arg0, %c0_i32 : i32, i32
  }
}

module attributes {stable_mosaic.version = 11 : i64} {
  func.func @flash_attn_kernel(%arg0: i32, %arg1: i32, %arg2: i32, %arg3: i32, %arg4: memref<1x1x8x8xbf16, #tpu.memory_space<vmem>>, %arg5: memref<1x1x8x8xbf16, #tpu.memory_space<vmem>>, %arg6: memref<1x1x8x8xbf16, #tpu.memory_space<vmem>>, %arg7: memref<1x1x8xf32, #tpu.memory_space<vmem>>, %arg8: memref<1x1x8x8xbf16, #tpu.memory_space<vmem>>, %arg9: memref<8x1xf32, #tpu.memory_space<vmem>>, %arg10: memref<8x1xf32, #tpu.memory_space<vmem>>, %arg11: memref<8x8xf32, #tpu.memory_space<vmem>>) attributes {dimension_semantics = [#tpu.dimension_semantics<parallel>, #tpu.dimension_semantics<parallel>, #tpu.dimension_semantics<parallel>, #tpu.dimension_semantics<arbitrary>], iteration_bounds = array<i64: 2, 4, 1, 1>, scalar_prefetch = 0 : i64, scratch_operands = 3 : i64, tpu.core_type = #tpu.core_type<tc>, window_params = [{transform_indices = @transform_0, window_bounds = array<i64: 1, 1, 8, 8>}, {transform_indices = @transform_1, window_bounds = array<i64: 1, 1, 8, 8>}, {transform_indices = @transform_2, window_bounds = array<i64: 1, 1, 8, 8>}, {transform_indices = @transform_3, window_bounds = array<i64: 1, 1, 8>}, {transform_indices = @transform_4, window_bounds = array<i64: 1, 1, 8, 8>}]} {
    %c0_i32 = arith.constant 0 : i32
    %0 = arith.cmpi eq, %arg3, %c0_i32 : i32
    %1 = arith.extui %0 : i1 to i32
    %c0_i32_0 = arith.constant 0 : i32
    %2 = arith.cmpi ne, %1, %c0_i32_0 : i32
    scf.if %2 {
      %cst_32 = arith.constant 0xFF800000 : f32
      %41 = vector.broadcast %cst_32 : f32 to vector<8x1xf32>
      %c0_33 = arith.constant 0 : index
      %c0_34 = arith.constant 0 : index
      %42 = vector.load %arg9[%c0_33, %c0_34] : memref<8x1xf32, #tpu.memory_space<vmem>>, vector<8x1xf32>
      tpu.vector_store %arg9[%c0_33, %c0_34], %41 {strides = array<i32>} : memref<8x1xf32, #tpu.memory_space<vmem>>, vector<8x1xf32>,
      %cst_35 = arith.constant 0.000000e+00 : f32
      %43 = vector.broadcast %cst_35 : f32 to vector<8x1xf32>
      %c0_36 = arith.constant 0 : index
      %c0_37 = arith.constant 0 : index
      %44 = vector.load %arg10[%c0_36, %c0_37] : memref<8x1xf32, #tpu.memory_space<vmem>>, vector<8x1xf32>
      tpu.vector_store %arg10[%c0_36, %c0_37], %43 {strides = array<i32>} : memref<8x1xf32, #tpu.memory_space<vmem>>, vector<8x1xf32>,
      %cst_38 = arith.constant 0.000000e+00 : f32
      %45 = vector.broadcast %cst_38 : f32 to vector<8x8xf32>
      %c0_39 = arith.constant 0 : index
      %c0_40 = arith.constant 0 : index
      %46 = vector.load %arg11[%c0_39, %c0_40] : memref<8x8xf32, #tpu.memory_space<vmem>>, vector<8x8xf32>
      tpu.vector_store %arg11[%c0_39, %c0_40], %45 {strides = array<i32>} : memref<8x8xf32, #tpu.memory_space<vmem>>, vector<8x8xf32>,
    } else {
    }
    %c0 = arith.constant 0 : index
    %c0_1 = arith.constant 0 : index
    %c0_2 = arith.constant 0 : index
    %c0_3 = arith.constant 0 : index
    %3 = vector.load %arg4[%c0, %c0_1, %c0_2, %c0_3] : memref<1x1x8x8xbf16, #tpu.memory_space<vmem>>, vector<1x1x8x8xbf16>
    %4 = vector.shape_cast %3 : vector<1x1x8x8xbf16> to vector<8x8xbf16>
    %c0_4 = arith.constant 0 : index
    %c0_5 = arith.constant 0 : index
    %c0_6 = arith.constant 0 : index
    %c0_7 = arith.constant 0 : index
    %5 = vector.load %arg5[%c0_4, %c0_5, %c0_6, %c0_7] : memref<1x1x8x8xbf16, #tpu.memory_space<vmem>>, vector<1x1x8x8xbf16>
    %6 = vector.shape_cast %5 : vector<1x1x8x8xbf16> to vector<8x8xbf16>
    %c0_8 = arith.constant 0 : index
    %c0_9 = arith.constant 0 : index
    %c0_10 = arith.constant 0 : index
    %c0_11 = arith.constant 0 : index
    %7 = vector.load %arg6[%c0_8, %c0_9, %c0_10, %c0_11] : memref<1x1x8x8xbf16, #tpu.memory_space<vmem>>, vector<1x1x8x8xbf16>
    %8 = vector.shape_cast %7 : vector<1x1x8x8xbf16> to vector<8x8xbf16>
    %9 = tpu.transpose %6, [1, 0] : vector<8x8xbf16> -> vector<8x8xbf16>
    %cst = arith.constant dense<0.000000e+00> : vector<8x8xf32>
    %10 = tpu.matmul %4, %9, %cst {dimension_numbers = #tpu.dot_dimension_numbers<[1], [0], [0], [1], [0, 0, 1, 1], [], []>} : vector<8x8xbf16>, vector<8x8xbf16>, vector<8x8xf32> -> vector<8x8xf32>
    %c0_12 = arith.constant 0 : index
    %c0_13 = arith.constant 0 : index
    %c0_14 = arith.constant 0 : index
    %11 = vector.load %arg7[%c0_12, %c0_13, %c0_14] : memref<1x1x8xf32, #tpu.memory_space<vmem>>, vector<1x1x8xf32>
    %12 = vector.shape_cast %11 : vector<1x1x8xf32> to vector<1x8xf32>
    %13 = vector.broadcast %12 : vector<1x8xf32> to vector<8x8xf32>
    %14 = arith.addf %10, %13 : vector<8x8xf32>
    %c0_15 = arith.constant 0 : index
    %c0_16 = arith.constant 0 : index
    %15 = vector.load %arg9[%c0_15, %c0_16] : memref<8x1xf32, #tpu.memory_space<vmem>>, vector<8x1xf32>
    %cst_17 = arith.constant dense<0xFF800000> : vector<8xf32>
    %16 = vector.multi_reduction <maximumf>, %14, %cst_17 [1] : vector<8x8xf32> to vector<8xf32>
    %17 = vector.shape_cast %16 : vector<8xf32> to vector<8x1xf32>
    %18 = arith.maximumf %15, %17 : vector<8x1xf32>
    %19 = arith.subf %15, %18 : vector<8x1xf32>
    %20 = math.exp %19 : vector<8x1xf32>
    %21 = vector.broadcast %18 : vector<8x1xf32> to vector<8x8xf32>
    %22 = arith.subf %14, %21 : vector<8x8xf32>
    %23 = math.exp %22 : vector<8x8xf32>
    %c0_18 = arith.constant 0 : index
    %c0_19 = arith.constant 0 : index
    %24 = vector.load %arg10[%c0_18, %c0_19] : memref<8x1xf32, #tpu.memory_space<vmem>>, vector<8x1xf32>
    %25 = arith.mulf %20, %24 : vector<8x1xf32>
    %cst_20 = arith.constant dense<0.000000e+00> : vector<8xf32>
    %26 = vector.multi_reduction <add>, %23, %cst_20 [1] : vector<8x8xf32> to vector<8xf32>
    %27 = vector.shape_cast %26 : vector<8xf32> to vector<8x1xf32>
    %28 = arith.addf %25, %27 : vector<8x1xf32>
    %c0_21 = arith.constant 0 : index
    %c0_22 = arith.constant 0 : index
    %29 = vector.load %arg10[%c0_21, %c0_22] : memref<8x1xf32, #tpu.memory_space<vmem>>, vector<8x1xf32>
    tpu.vector_store %arg10[%c0_21, %c0_22], %28 {strides = array<i32>} : memref<8x1xf32, #tpu.memory_space<vmem>>, vector<8x1xf32>,
    %c0_23 = arith.constant 0 : index
    %c0_24 = arith.constant 0 : index
    %30 = vector.load %arg11[%c0_23, %c0_24] : memref<8x8xf32, #tpu.memory_space<vmem>>, vector<8x8xf32>
    %31 = vector.broadcast %20 : vector<8x1xf32> to vector<8x8xf32>
    %32 = arith.mulf %31, %30 : vector<8x8xf32>
    %33 = arith.truncf %23 : vector<8x8xf32> to vector<8x8xbf16>
    %cst_25 = arith.constant dense<0.000000e+00> : vector<8x8xf32>
    %34 = tpu.matmul %33, %8, %cst_25 {dimension_numbers = #tpu.dot_dimension_numbers<[1], [0], [0], [1], [0, 0, 1, 1], [], []>} : vector<8x8xbf16>, vector<8x8xbf16>, vector<8x8xf32> -> vector<8x8xf32>
    %35 = arith.addf %32, %34 : vector<8x8xf32>
    %c0_26 = arith.constant 0 : index
    %c0_27 = arith.constant 0 : index
    %36 = vector.load %arg11[%c0_26, %c0_27] : memref<8x8xf32, #tpu.memory_space<vmem>>, vector<8x8xf32>
    tpu.vector_store %arg11[%c0_26, %c0_27], %35 {strides = array<i32>} : memref<8x8xf32, #tpu.memory_space<vmem>>, vector<8x8xf32>,
    %c0_28 = arith.constant 0 : index
    %c0_29 = arith.constant 0 : index
    %37 = vector.load %arg9[%c0_28, %c0_29] : memref<8x1xf32, #tpu.memory_space<vmem>>, vector<8x1xf32>
    tpu.vector_store %arg9[%c0_28, %c0_29], %18 {strides = array<i32>} : memref<8x1xf32, #tpu.memory_space<vmem>>, vector<8x1xf32>,
    %c0_i32_30 = arith.constant 0 : i32
    %38 = arith.cmpi eq, %arg3, %c0_i32_30 : i32
    %39 = arith.extui %38 : i1 to i32
    %c0_i32_31 = arith.constant 0 : i32
    %40 = arith.cmpi ne, %39, %c0_i32_31 : i32
    scf.if %40 {
      %c0_32 = arith.constant 0 : index
      %c0_33 = arith.constant 0 : index
      %41 = vector.load %arg10[%c0_32, %c0_33] : memref<8x1xf32, #tpu.memory_space<vmem>>, vector<8x1xf32>
      %42 = tpu.reciprocal %41 {approx = true} : vector<8x1xf32> -> vector<8x1xf32>
      %c0_34 = arith.constant 0 : index
      %c0_35 = arith.constant 0 : index
      %43 = vector.load %arg11[%c0_34, %c0_35] : memref<8x8xf32, #tpu.memory_space<vmem>>, vector<8x8xf32>
      %44 = vector.broadcast %42 : vector<8x1xf32> to vector<8x8xf32>
      %45 = arith.mulf %43, %44 : vector<8x8xf32>
      %46 = arith.truncf %45 : vector<8x8xf32> to vector<8x8xbf16>
      %c0_36 = arith.constant 0 : index
      %c0_37 = arith.constant 0 : index
      %c0_38 = arith.constant 0 : index
      %c0_39 = arith.constant 0 : index
      %47 = vector.load %arg8[%c0_36, %c0_37, %c0_38, %c0_39] : memref<1x1x8x8xbf16, #tpu.memory_space<vmem>>, vector<1x1x8x8xbf16>
      %48 = vector.shape_cast %47 : vector<1x1x8x8xbf16> to vector<8x8xbf16>
      %49 = vector.shape_cast %46 : vector<8x8xbf16> to vector<1x1x8x8xbf16>
      tpu.vector_store %arg8[%c0_36, %c0_37, %c0_38, %c0_39], %49 {strides = array<i32>} : memref<1x1x8x8xbf16, #tpu.memory_space<vmem>>, vector<1x1x8x8xbf16>,
    } else {
    }
    return
  }
  func.func @transform_0(%arg0: i32, %arg1: i32, %arg2: i32, %arg3: i32) -> (i32, i32, i32, i32) {
    %c0_i32 = arith.constant 0 : i32
    %c0_i32_0 = arith.constant 0 : i32
    return %arg0, %arg1, %arg2, %c0_i32 : i32, i32, i32, i32
  }
  func.func @transform_1(%arg0: i32, %arg1: i32, %arg2: i32, %arg3: i32) -> (i32, i32, i32, i32) {
    %c0_i32 = arith.constant 0 : i32
    %c0_i32_0 = arith.constant 0 : i32
    return %arg0, %arg1, %arg3, %c0_i32 : i32, i32, i32, i32
  }
  func.func @transform_2(%arg0: i32, %arg1: i32, %arg2: i32, %arg3: i32) -> (i32, i32, i32, i32) {
    %c0_i32 = arith.constant 0 : i32
    %c0_i32_0 = arith.constant 0 : i32
    return %arg0, %arg1, %arg3, %c0_i32 : i32, i32, i32, i32
  }
  func.func @transform_3(%arg0: i32, %arg1: i32, %arg2: i32, %arg3: i32) -> (i32, i32, i32) {
    %c0_i32 = arith.constant 0 : i32
    %c0_i32_0 = arith.constant 0 : i32
    return %arg0, %c0_i32, %arg3 : i32, i32, i32
  }
  func.func @transform_4(%arg0: i32, %arg1: i32, %arg2: i32, %arg3: i32) -> (i32, i32, i32, i32) {
    %c0_i32 = arith.constant 0 : i32
    %c0_i32_0 = arith.constant 0 : i32
    return %arg0, %arg1, %arg2, %c0_i32 : i32, i32, i32, i32
  }
}

module attributes {stable_mosaic.version = 11 : i64} {
  func.func @linear_add_ln_kernel(%arg0: i32, %arg1: memref<16x32xbf16, #tpu.memory_space<vmem>>, %arg2: memref<32x32xbf16, #tpu.memory_space<vmem>>, %arg3: memref<1x32xf32, #tpu.memory_space<vmem>>, %arg4: memref<16x32xbf16, #tpu.memory_space<vmem>>, %arg5: memref<1x32xf32, #tpu.memory_space<vmem>>, %arg6: memref<1x32xf32, #tpu.memory_space<vmem>>, %arg7: memref<16x32xbf16, #tpu.memory_space<vmem>>) attributes {dimension_semantics = [#tpu.dimension_semantics<parallel>], iteration_bounds = array<i64: 1>, scalar_prefetch = 0 : i64, scratch_operands = 0 : i64, tpu.core_type = #tpu.core_type<tc>, window_params = [{transform_indices = @transform_0, window_bounds = array<i64: 16, 32>}, {pipeline_mode = #tpu.pipeline_mode<synchronous>, transform_indices = @transform_1, window_bounds = array<i64: 32, 32>}, {pipeline_mode = #tpu.pipeline_mode<synchronous>, transform_indices = @transform_2, window_bounds = array<i64: 1, 32>}, {transform_indices = @transform_3, window_bounds = array<i64: 16, 32>}, {pipeline_mode = #tpu.pipeline_mode<synchronous>, transform_indices = @transform_4, window_bounds = array<i64: 1, 32>}, {pipeline_mode = #tpu.pipeline_mode<synchronous>, transform_indices = @transform_5, window_bounds = array<i64: 1, 32>}, {transform_indices = @transform_6, window_bounds = array<i64: 16, 32>}]} {
    %c0 = arith.constant 0 : index
    %c0_0 = arith.constant 0 : index
    %0 = vector.load %arg1[%c0, %c0_0] : memref<16x32xbf16, #tpu.memory_space<vmem>>, vector<16x32xbf16>
    %c0_1 = arith.constant 0 : index
    %c0_2 = arith.constant 0 : index
    %1 = vector.load %arg2[%c0_1, %c0_2] : memref<32x32xbf16, #tpu.memory_space<vmem>>, vector<32x32xbf16>
    %cst = arith.constant dense<0.000000e+00> : vector<16x32xf32>
    %2 = tpu.matmul %0, %1, %cst {dimension_numbers = #tpu.dot_dimension_numbers<[1], [0], [0], [1], [0, 0, 1, 1], [], []>} : vector<16x32xbf16>, vector<32x32xbf16>, vector<16x32xf32> -> vector<16x32xf32>
    %c0_3 = arith.constant 0 : index
    %c0_4 = arith.constant 0 : index
    %3 = vector.load %arg3[%c0_3, %c0_4] : memref<1x32xf32, #tpu.memory_space<vmem>>, vector<1x32xf32>
    %4 = vector.broadcast %3 : vector<1x32xf32> to vector<16x32xf32>
    %5 = arith.addf %2, %4 : vector<16x32xf32>
    %c0_5 = arith.constant 0 : index
    %c0_6 = arith.constant 0 : index
    %6 = vector.load %arg4[%c0_5, %c0_6] : memref<16x32xbf16, #tpu.memory_space<vmem>>, vector<16x32xbf16>
    %7 = arith.extf %6 : vector<16x32xbf16> to vector<16x32xf32>
    %8 = arith.addf %5, %7 : vector<16x32xf32>
    %cst_7 = arith.constant dense<0.000000e+00> : vector<16xf32>
    %9 = vector.multi_reduction <add>, %8, %cst_7 [1] : vector<16x32xf32> to vector<16xf32>
    %10 = vector.shape_cast %9 : vector<16xf32> to vector<16x1xf32>
    %cst_8 = arith.constant 3.200000e+01 : f32
    %11 = vector.broadcast %cst_8 : f32 to vector<16x1xf32>
    %12 = arith.divf %10, %11 : vector<16x1xf32>
    %13 = vector.broadcast %12 : vector<16x1xf32> to vector<16x32xf32>
    %14 = arith.subf %8, %13 : vector<16x32xf32>
    %15 = arith.mulf %14, %14 : vector<16x32xf32>
    %cst_9 = arith.constant dense<0.000000e+00> : vector<16xf32>
    %16 = vector.multi_reduction <add>, %15, %cst_9 [1] : vector<16x32xf32> to vector<16xf32>
    %17 = vector.shape_cast %16 : vector<16xf32> to vector<16x1xf32>
    %cst_10 = arith.constant 3.200000e+01 : f32
    %18 = vector.broadcast %cst_10 : f32 to vector<16x1xf32>
    %19 = arith.divf %17, %18 : vector<16x1xf32>
    %20 = vector.broadcast %12 : vector<16x1xf32> to vector<16x32xf32>
    %21 = arith.subf %8, %20 : vector<16x32xf32>
    %cst_11 = arith.constant 9.99999996E-13 : f32
    %22 = vector.broadcast %cst_11 : f32 to vector<16x1xf32>
    %23 = arith.addf %19, %22 : vector<16x1xf32>
    %24 = math.rsqrt %23 : vector<16x1xf32>
    %25 = vector.broadcast %24 : vector<16x1xf32> to vector<16x32xf32>
    %26 = arith.mulf %21, %25 : vector<16x32xf32>
    %c0_12 = arith.constant 0 : index
    %c0_13 = arith.constant 0 : index
    %27 = vector.load %arg5[%c0_12, %c0_13] : memref<1x32xf32, #tpu.memory_space<vmem>>, vector<1x32xf32>
    %28 = vector.broadcast %27 : vector<1x32xf32> to vector<16x32xf32>
    %29 = arith.mulf %26, %28 : vector<16x32xf32>
    %c0_14 = arith.constant 0 : index
    %c0_15 = arith.constant 0 : index
    %30 = vector.load %arg6[%c0_14, %c0_15] : memref<1x32xf32, #tpu.memory_space<vmem>>, vector<1x32xf32>
    %31 = vector.broadcast %30 : vector<1x32xf32> to vector<16x32xf32>
    %32 = arith.addf %29, %31 : vector<16x32xf32>
    %33 = arith.truncf %32 : vector<16x32xf32> to vector<16x32xbf16>
    %c0_16 = arith.constant 0 : index
    %c0_17 = arith.constant 0 : index
    %34 = vector.load %arg7[%c0_16, %c0_17] : memref<16x32xbf16, #tpu.memory_space<vmem>>, vector<16x32xbf16>
    tpu.vector_store %arg7[%c0_16, %c0_17], %33 {strides = array<i32>} : memref<16x32xbf16, #tpu.memory_space<vmem>>, vector<16x32xbf16>,
    return
  }
  func.func @transform_0(%arg0: i32) -> (i32, i32) {
    %c0_i32 = arith.constant 0 : i32
    %c0_i32_0 = arith.constant 0 : i32
    return %arg0, %c0_i32 : i32, i32
  }
  func.func @transform_1(%arg0: i32) -> (i32, i32) {
    %c0_i32 = arith.constant 0 : i32
    %c0_i32_0 = arith.constant 0 : i32
    %c0_i32_1 = arith.constant 0 : i32
    return %c0_i32, %c0_i32_0 : i32, i32
  }
  func.func @transform_2(%arg0: i32) -> (i32, i32) {
    %c0_i32 = arith.constant 0 : i32
    %c0_i32_0 = arith.constant 0 : i32
    %c0_i32_1 = arith.constant 0 : i32
    return %c0_i32, %c0_i32_0 : i32, i32
  }
  func.func @transform_3(%arg0: i32) -> (i32, i32) {
    %c0_i32 = arith.constant 0 : i32
    %c0_i32_0 = arith.constant 0 : i32
    return %arg0, %c0_i32 : i32, i32
  }
  func.func @transform_4(%arg0: i32) -> (i32, i32) {
    %c0_i32 = arith.constant 0 : i32
    %c0_i32_0 = arith.constant 0 : i32
    %c0_i32_1 = arith.constant 0 : i32
    return %c0_i32, %c0_i32_0 : i32, i32
  }
  func.func @transform_5(%arg0: i32) -> (i32, i32) {
    %c0_i32 = arith.constant 0 : i32
    %c0_i32_0 = arith.constant 0 : i32
    %c0_i32_1 = arith.constant 0 : i32
    return %c0_i32, %c0_i32_0 : i32, i32
  }
  func.func @transform_6(%arg0: i32) -> (i32, i32) {
    %c0_i32 = arith.constant 0 : i32
    %c0_i32_0 = arith.constant 0 : i32
    return %arg0, %c0_i32 : i32, i32
  }
}

module attributes {stable_mosaic.version = 11 : i64} {
  func.func @linear_kernel(%arg0: i32, %arg1: memref<16x32xbf16, #tpu.memory_space<vmem>>, %arg2: memref<32x64xbf16, #tpu.memory_space<vmem>>, %arg3: memref<1x64xf32, #tpu.memory_space<vmem>>, %arg4: memref<16x64xbf16, #tpu.memory_space<vmem>>) attributes {dimension_semantics = [#tpu.dimension_semantics<parallel>], iteration_bounds = array<i64: 1>, scalar_prefetch = 0 : i64, scratch_operands = 0 : i64, tpu.core_type = #tpu.core_type<tc>, window_params = [{transform_indices = @transform_0, window_bounds = array<i64: 16, 32>}, {pipeline_mode = #tpu.pipeline_mode<synchronous>, transform_indices = @transform_1, window_bounds = array<i64: 32, 64>}, {pipeline_mode = #tpu.pipeline_mode<synchronous>, transform_indices = @transform_2, window_bounds = array<i64: 1, 64>}, {transform_indices = @transform_3, window_bounds = array<i64: 16, 64>}]} {
    %c0 = arith.constant 0 : index
    %c0_0 = arith.constant 0 : index
    %0 = vector.load %arg1[%c0, %c0_0] : memref<16x32xbf16, #tpu.memory_space<vmem>>, vector<16x32xbf16>
    %c0_1 = arith.constant 0 : index
    %c0_2 = arith.constant 0 : index
    %1 = vector.load %arg2[%c0_1, %c0_2] : memref<32x64xbf16, #tpu.memory_space<vmem>>, vector<32x64xbf16>
    %cst = arith.constant dense<0.000000e+00> : vector<16x64xf32>
    %2 = tpu.matmul %0, %1, %cst {dimension_numbers = #tpu.dot_dimension_numbers<[1], [0], [0], [1], [0, 0, 1, 1], [], []>} : vector<16x32xbf16>, vector<32x64xbf16>, vector<16x64xf32> -> vector<16x64xf32>
    %c0_3 = arith.constant 0 : index
    %c0_4 = arith.constant 0 : index
    %3 = vector.load %arg3[%c0_3, %c0_4] : memref<1x64xf32, #tpu.memory_space<vmem>>, vector<1x64xf32>
    %4 = vector.broadcast %3 : vector<1x64xf32> to vector<16x64xf32>
    %5 = arith.addf %2, %4 : vector<16x64xf32>
    %6 = arith.mulf %5, %5 : vector<16x64xf32>
    %7 = arith.mulf %5, %6 : vector<16x64xf32>
    %cst_5 = arith.constant 4.471500e-02 : f32
    %8 = vector.broadcast %cst_5 : f32 to vector<16x64xf32>
    %9 = arith.mulf %8, %7 : vector<16x64xf32>
    %10 = arith.addf %5, %9 : vector<16x64xf32>
    %cst_6 = arith.constant 0.797884583 : f32
    %11 = vector.broadcast %cst_6 : f32 to vector<16x64xf32>
    %12 = arith.mulf %11, %10 : vector<16x64xf32>
    %13 = math.tanh %12 : vector<16x64xf32>
    %cst_7 = arith.constant 1.000000e+00 : f32
    %14 = vector.broadcast %cst_7 : f32 to vector<16x64xf32>
    %15 = arith.addf %14, %13 : vector<16x64xf32>
    %cst_8 = arith.constant 5.000000e-01 : f32
    %16 = vector.broadcast %cst_8 : f32 to vector<16x64xf32>
    %17 = arith.mulf %16, %15 : vector<16x64xf32>
    %18 = arith.mulf %5, %17 : vector<16x64xf32>
    %19 = arith.truncf %18 : vector<16x64xf32> to vector<16x64xbf16>
    %c0_9 = arith.constant 0 : index
    %c0_10 = arith.constant 0 : index
    %20 = vector.load %arg4[%c0_9, %c0_10] : memref<16x64xbf16, #tpu.memory_space<vmem>>, vector<16x64xbf16>
    tpu.vector_store %arg4[%c0_9, %c0_10], %19 {strides = array<i32>} : memref<16x64xbf16, #tpu.memory_space<vmem>>, vector<16x64xbf16>,
    return
  }
  func.func @transform_0(%arg0: i32) -> (i32, i32) {
    %c0_i32 = arith.constant 0 : i32
    %c0_i32_0 = arith.constant 0 : i32
    return %arg0, %c0_i32 : i32, i32
  }
  func.func @transform_1(%arg0: i32) -> (i32, i32) {
    %c0_i32 = arith.constant 0 : i32
    %c0_i32_0 = arith.constant 0 : i32
    %c0_i32_1 = arith.constant 0 : i32
    return %c0_i32, %c0_i32_0 : i32, i32
  }
  func.func @transform_2(%arg0: i32) -> (i32, i32) {
    %c0_i32 = arith.constant 0 : i32
    %c0_i32_0 = arith.constant 0 : i32
    %c0_i32_1 = arith.constant 0 : i32
    return %c0_i32, %c0_i32_0 : i32, i32
  }
  func.func @transform_3(%arg0: i32) -> (i32, i32) {
    %c0_i32 = arith.constant 0 : i32
    %c0_i32_0 = arith.constant 0 : i32
    return %arg0, %c0_i32 : i32, i32
  }
}

module attributes {stable_mosaic.version = 11 : i64} {
  func.func @linear_add_ln_kernel(%arg0: i32, %arg1: memref<16x64xbf16, #tpu.memory_space<vmem>>, %arg2: memref<64x32xbf16, #tpu.memory_space<vmem>>, %arg3: memref<1x32xf32, #tpu.memory_space<vmem>>, %arg4: memref<16x32xbf16, #tpu.memory_space<vmem>>, %arg5: memref<1x32xf32, #tpu.memory_space<vmem>>, %arg6: memref<1x32xf32, #tpu.memory_space<vmem>>, %arg7: memref<16x32xbf16, #tpu.memory_space<vmem>>) attributes {dimension_semantics = [#tpu.dimension_semantics<parallel>], iteration_bounds = array<i64: 1>, scalar_prefetch = 0 : i64, scratch_operands = 0 : i64, tpu.core_type = #tpu.core_type<tc>, window_params = [{transform_indices = @transform_0, window_bounds = array<i64: 16, 64>}, {pipeline_mode = #tpu.pipeline_mode<synchronous>, transform_indices = @transform_1, window_bounds = array<i64: 64, 32>}, {pipeline_mode = #tpu.pipeline_mode<synchronous>, transform_indices = @transform_2, window_bounds = array<i64: 1, 32>}, {transform_indices = @transform_3, window_bounds = array<i64: 16, 32>}, {pipeline_mode = #tpu.pipeline_mode<synchronous>, transform_indices = @transform_4, window_bounds = array<i64: 1, 32>}, {pipeline_mode = #tpu.pipeline_mode<synchronous>, transform_indices = @transform_5, window_bounds = array<i64: 1, 32>}, {transform_indices = @transform_6, window_bounds = array<i64: 16, 32>}]} {
    %c0 = arith.constant 0 : index
    %c0_0 = arith.constant 0 : index
    %0 = vector.load %arg1[%c0, %c0_0] : memref<16x64xbf16, #tpu.memory_space<vmem>>, vector<16x64xbf16>
    %c0_1 = arith.constant 0 : index
    %c0_2 = arith.constant 0 : index
    %1 = vector.load %arg2[%c0_1, %c0_2] : memref<64x32xbf16, #tpu.memory_space<vmem>>, vector<64x32xbf16>
    %cst = arith.constant dense<0.000000e+00> : vector<16x32xf32>
    %2 = tpu.matmul %0, %1, %cst {dimension_numbers = #tpu.dot_dimension_numbers<[1], [0], [0], [1], [0, 0, 1, 1], [], []>} : vector<16x64xbf16>, vector<64x32xbf16>, vector<16x32xf32> -> vector<16x32xf32>
    %c0_3 = arith.constant 0 : index
    %c0_4 = arith.constant 0 : index
    %3 = vector.load %arg3[%c0_3, %c0_4] : memref<1x32xf32, #tpu.memory_space<vmem>>, vector<1x32xf32>
    %4 = vector.broadcast %3 : vector<1x32xf32> to vector<16x32xf32>
    %5 = arith.addf %2, %4 : vector<16x32xf32>
    %c0_5 = arith.constant 0 : index
    %c0_6 = arith.constant 0 : index
    %6 = vector.load %arg4[%c0_5, %c0_6] : memref<16x32xbf16, #tpu.memory_space<vmem>>, vector<16x32xbf16>
    %7 = arith.extf %6 : vector<16x32xbf16> to vector<16x32xf32>
    %8 = arith.addf %5, %7 : vector<16x32xf32>
    %cst_7 = arith.constant dense<0.000000e+00> : vector<16xf32>
    %9 = vector.multi_reduction <add>, %8, %cst_7 [1] : vector<16x32xf32> to vector<16xf32>
    %10 = vector.shape_cast %9 : vector<16xf32> to vector<16x1xf32>
    %cst_8 = arith.constant 3.200000e+01 : f32
    %11 = vector.broadcast %cst_8 : f32 to vector<16x1xf32>
    %12 = arith.divf %10, %11 : vector<16x1xf32>
    %13 = vector.broadcast %12 : vector<16x1xf32> to vector<16x32xf32>
    %14 = arith.subf %8, %13 : vector<16x32xf32>
    %15 = arith.mulf %14, %14 : vector<16x32xf32>
    %cst_9 = arith.constant dense<0.000000e+00> : vector<16xf32>
    %16 = vector.multi_reduction <add>, %15, %cst_9 [1] : vector<16x32xf32> to vector<16xf32>
    %17 = vector.shape_cast %16 : vector<16xf32> to vector<16x1xf32>
    %cst_10 = arith.constant 3.200000e+01 : f32
    %18 = vector.broadcast %cst_10 : f32 to vector<16x1xf32>
    %19 = arith.divf %17, %18 : vector<16x1xf32>
    %20 = vector.broadcast %12 : vector<16x1xf32> to vector<16x32xf32>
    %21 = arith.subf %8, %20 : vector<16x32xf32>
    %cst_11 = arith.constant 9.99999996E-13 : f32
    %22 = vector.broadcast %cst_11 : f32 to vector<16x1xf32>
    %23 = arith.addf %19, %22 : vector<16x1xf32>
    %24 = math.rsqrt %23 : vector<16x1xf32>
    %25 = vector.broadcast %24 : vector<16x1xf32> to vector<16x32xf32>
    %26 = arith.mulf %21, %25 : vector<16x32xf32>
    %c0_12 = arith.constant 0 : index
    %c0_13 = arith.constant 0 : index
    %27 = vector.load %arg5[%c0_12, %c0_13] : memref<1x32xf32, #tpu.memory_space<vmem>>, vector<1x32xf32>
    %28 = vector.broadcast %27 : vector<1x32xf32> to vector<16x32xf32>
    %29 = arith.mulf %26, %28 : vector<16x32xf32>
    %c0_14 = arith.constant 0 : index
    %c0_15 = arith.constant 0 : index
    %30 = vector.load %arg6[%c0_14, %c0_15] : memref<1x32xf32, #tpu.memory_space<vmem>>, vector<1x32xf32>
    %31 = vector.broadcast %30 : vector<1x32xf32> to vector<16x32xf32>
    %32 = arith.addf %29, %31 : vector<16x32xf32>
    %33 = arith.truncf %32 : vector<16x32xf32> to vector<16x32xbf16>
    %c0_16 = arith.constant 0 : index
    %c0_17 = arith.constant 0 : index
    %34 = vector.load %arg7[%c0_16, %c0_17] : memref<16x32xbf16, #tpu.memory_space<vmem>>, vector<16x32xbf16>
    tpu.vector_store %arg7[%c0_16, %c0_17], %33 {strides = array<i32>} : memref<16x32xbf16, #tpu.memory_space<vmem>>, vector<16x32xbf16>,
    return
  }
  func.func @transform_0(%arg0: i32) -> (i32, i32) {
    %c0_i32 = arith.constant 0 : i32
    %c0_i32_0 = arith.constant 0 : i32
    return %arg0, %c0_i32 : i32, i32
  }
  func.func @transform_1(%arg0: i32) -> (i32, i32) {
    %c0_i32 = arith.constant 0 : i32
    %c0_i32_0 = arith.constant 0 : i32
    %c0_i32_1 = arith.constant 0 : i32
    return %c0_i32, %c0_i32_0 : i32, i32
  }
  func.func @transform_2(%arg0: i32) -> (i32, i32) {
    %c0_i32 = arith.constant 0 : i32
    %c0_i32_0 = arith.constant 0 : i32
    %c0_i32_1 = arith.constant 0 : i32
    return %c0_i32, %c0_i32_0 : i32, i32
  }
  func.func @transform_3(%arg0: i32) -> (i32, i32) {
    %c0_i32 = arith.constant 0 : i32
    %c0_i32_0 = arith.constant 0 : i32
    return %arg0, %c0_i32 : i32, i32
  }
  func.func @transform_4(%arg0: i32) -> (i32, i32) {
    %c0_i32 = arith.constant 0 : i32
    %c0_i32_0 = arith.constant 0 : i32
    %c0_i32_1 = arith.constant 0 : i32
    return %c0_i32, %c0_i32_0 : i32, i32
  }
  func.func @transform_5(%arg0: i32) -> (i32, i32) {
    %c0_i32 = arith.constant 0 : i32
    %c0_i32_0 = arith.constant 0 : i32
    %c0_i32_1 = arith.constant 0 : i32
    return %c0_i32, %c0_i32_0 : i32, i32
  }
  func.func @transform_6(%arg0: i32) -> (i32, i32) {
    %c0_i32 = arith.constant 0 : i32
    %c0_i32_0 = arith.constant 0 : i32
    return %arg0, %c0_i32 : i32, i32
  }
}

module attributes {stable_mosaic.version = 11 : i64} {
  func.func @pooler_fc1_kernel(%arg0: i32, %arg1: memref<1x1x32xbf16, #tpu.memory_space<vmem>>, %arg2: memref<32x32xbf16, #tpu.memory_space<vmem>>, %arg3: memref<1x32xf32, #tpu.memory_space<vmem>>, %arg4: memref<32x128xbf16, #tpu.memory_space<vmem>>, %arg5: memref<1x128xf32, #tpu.memory_space<vmem>>, %arg6: memref<1x1x128xf32, #tpu.memory_space<vmem>>) attributes {dimension_semantics = [#tpu.dimension_semantics<parallel>], iteration_bounds = array<i64: 2>, scalar_prefetch = 0 : i64, scratch_operands = 0 : i64, tpu.core_type = #tpu.core_type<tc>, window_params = [{transform_indices = @transform_0, window_bounds = array<i64: 1, 1, 32>}, {pipeline_mode = #tpu.pipeline_mode<synchronous>, transform_indices = @transform_1, window_bounds = array<i64: 32, 32>}, {pipeline_mode = #tpu.pipeline_mode<synchronous>, transform_indices = @transform_2, window_bounds = array<i64: 1, 32>}, {pipeline_mode = #tpu.pipeline_mode<synchronous>, transform_indices = @transform_3, window_bounds = array<i64: 32, 128>}, {pipeline_mode = #tpu.pipeline_mode<synchronous>, transform_indices = @transform_4, window_bounds = array<i64: 1, 128>}, {transform_indices = @transform_5, window_bounds = array<i64: 1, 1, 128>}]} {
    %c0 = arith.constant 0 : index
    %c0_0 = arith.constant 0 : index
    %c0_1 = arith.constant 0 : index
    %0 = vector.load %arg1[%c0, %c0_0, %c0_1] : memref<1x1x32xbf16, #tpu.memory_space<vmem>>, vector<1x1x32xbf16>
    %1 = vector.shape_cast %0 : vector<1x1x32xbf16> to vector<1x32xbf16>
    %c0_2 = arith.constant 0 : index
    %c0_3 = arith.constant 0 : index
    %2 = vector.load %arg2[%c0_2, %c0_3] : memref<32x32xbf16, #tpu.memory_space<vmem>>, vector<32x32xbf16>
    %cst = arith.constant dense<0.000000e+00> : vector<1x32xf32>
    %3 = tpu.matmul %1, %2, %cst {dimension_numbers = #tpu.dot_dimension_numbers<[1], [0], [0], [1], [0, 0, 1, 1], [], []>} : vector<1x32xbf16>, vector<32x32xbf16>, vector<1x32xf32> -> vector<1x32xf32>
    %c0_4 = arith.constant 0 : index
    %c0_5 = arith.constant 0 : index
    %4 = vector.load %arg3[%c0_4, %c0_5] : memref<1x32xf32, #tpu.memory_space<vmem>>, vector<1x32xf32>
    %5 = arith.addf %3, %4 : vector<1x32xf32>
    %6 = math.tanh %5 : vector<1x32xf32>
    %7 = arith.truncf %6 : vector<1x32xf32> to vector<1x32xbf16>
    %c0_6 = arith.constant 0 : index
    %c0_7 = arith.constant 0 : index
    %8 = vector.load %arg4[%c0_6, %c0_7] : memref<32x128xbf16, #tpu.memory_space<vmem>>, vector<32x128xbf16>
    %cst_8 = arith.constant dense<0.000000e+00> : vector<1x128xf32>
    %9 = tpu.matmul %7, %8, %cst_8 {dimension_numbers = #tpu.dot_dimension_numbers<[1], [0], [0], [1], [0, 0, 1, 1], [], []>} : vector<1x32xbf16>, vector<32x128xbf16>, vector<1x128xf32> -> vector<1x128xf32>
    %c0_9 = arith.constant 0 : index
    %c0_10 = arith.constant 0 : index
    %10 = vector.load %arg5[%c0_9, %c0_10] : memref<1x128xf32, #tpu.memory_space<vmem>>, vector<1x128xf32>
    %11 = arith.addf %9, %10 : vector<1x128xf32>
    %c0_11 = arith.constant 0 : index
    %c0_12 = arith.constant 0 : index
    %c0_13 = arith.constant 0 : index
    %12 = vector.load %arg6[%c0_11, %c0_12, %c0_13] : memref<1x1x128xf32, #tpu.memory_space<vmem>>, vector<1x1x128xf32>
    %13 = vector.shape_cast %12 : vector<1x1x128xf32> to vector<1x128xf32>
    %14 = vector.shape_cast %11 : vector<1x128xf32> to vector<1x1x128xf32>
    tpu.vector_store %arg6[%c0_11, %c0_12, %c0_13], %14 {strides = array<i32>} : memref<1x1x128xf32, #tpu.memory_space<vmem>>, vector<1x1x128xf32>,
    return
  }
  func.func @transform_0(%arg0: i32) -> (i32, i32, i32) {
    %c0_i32 = arith.constant 0 : i32
    %c0_i32_0 = arith.constant 0 : i32
    %c0_i32_1 = arith.constant 0 : i32
    return %arg0, %c0_i32, %c0_i32_0 : i32, i32, i32
  }
  func.func @transform_1(%arg0: i32) -> (i32, i32) {
    %c0_i32 = arith.constant 0 : i32
    %c0_i32_0 = arith.constant 0 : i32
    %c0_i32_1 = arith.constant 0 : i32
    return %c0_i32, %c0_i32_0 : i32, i32
  }
  func.func @transform_2(%arg0: i32) -> (i32, i32) {
    %c0_i32 = arith.constant 0 : i32
    %c0_i32_0 = arith.constant 0 : i32
    %c0_i32_1 = arith.constant 0 : i32
    return %c0_i32, %c0_i32_0 : i32, i32
  }
  func.func @transform_3(%arg0: i32) -> (i32, i32) {
    %c0_i32 = arith.constant 0 : i32
    %c0_i32_0 = arith.constant 0 : i32
    %c0_i32_1 = arith.constant 0 : i32
    return %c0_i32, %c0_i32_0 : i32, i32
  }
  func.func @transform_4(%arg0: i32) -> (i32, i32) {
    %c0_i32 = arith.constant 0 : i32
    %c0_i32_0 = arith.constant 0 : i32
    %c0_i32_1 = arith.constant 0 : i32
    return %c0_i32, %c0_i32_0 : i32, i32
  }
  func.func @transform_5(%arg0: i32) -> (i32, i32, i32) {
    %c0_i32 = arith.constant 0 : i32
    %c0_i32_0 = arith.constant 0 : i32
    %c0_i32_1 = arith.constant 0 : i32
    return %arg0, %c0_i32, %c0_i32_0 : i32, i32, i32
  }
}

</mosaic_0001>

<llo_original>
// kernel: _lambda_.12
$region0: #{_lambda_.12}
  #allocation0 [shape = 'u32[]', space=smem, size = 0x4, offset = 0x4, fixed_abs, tag = 'smem constant byte address 0x4 - core index']
  #allocation1 [shape = 'u32[144,128]{1,0:T(1,128)}', space=vmem, size = 0x12000, scoped, tag = 'internal scratch']
  %s0 = inlined_call_operand.vmem [shape: f32[16,32], index: 0, kind: input, shape index: {}]
  %s1 = inlined_call_operand.vmem [shape: f32[1,32], index: 1, kind: input, shape index: {}]
  %s2 = inlined_call_operand.vmem [shape: f32[1,32], index: 2, kind: input, shape index: {}]
  %s3 = inlined_call_operand.vmem [shape: bf16[16,32], index: 3, kind: output, shape index: {}]
  %s4 = sld [smem:[#allocation0]]
  $region22: #{_lambda_.12} parent=0
    _
  %s6 = ssub.s32 1, %s4
  %s7 = scalar_select 0, %s6, %s4
  // Predicated region
  $region2: #{_lambda_.12} parent=0 // pred_check
    _
  $region3: #{_lambda_.12} parent=0 // pred_check_branch
    %9 = sbr.rel (0) target = $region5
  $region4: #{_lambda_.12} parent=0 // pred_region
    _
  $region5: #{_lambda_.12} parent=0 // pred_fallthru
    _
  // Predicated region
  $region6: #{_lambda_.12} parent=0 // pred_check
    _
  $region7: #{_lambda_.12} parent=0 // pred_check_branch
    %11 = sbr.rel (0) target = $region9
  $region8: #{_lambda_.12} parent=0 // pred_region
    _
  $region9: #{_lambda_.12} parent=0 // pred_fallthru
    _
  // Predicated region
  $region10: #{_lambda_.12} parent=0 // pred_check
    _
  $region11: #{_lambda_.12} parent=0 // pred_check_branch
    %13 = sbr.rel (0) target = $region13
  $region12: #{_lambda_.12} parent=0 // pred_region
    _
  $region13: #{_lambda_.12} parent=0 // pred_fallthru
    _
  %v14 = vld [vmem:[%s0] sm:$0xff]
  %v15 = vld [vmem:[%s0 + $0x8] sm:$0xff]
  %vm16 = vcmask 261120
  %v17 = vsel %vm16, %v14, 0.0
  %18 = vadd.xlane.f32.xlu0 %v17
  %v19 = vpop.xlane.xlu0 %18
  %v20 = vsel %vm16, %v15, 0.0
  %21 = vadd.xlane.f32.xlu0 %v20
  %v22 = vpop.xlane.xlu0 %21
  %v23 = vrcp.pop 32.0
  %v24 = vmul.f32 %v19, %v23
  %v25 = vmul.f32 %v22, %v23
  %v26 = vsub.f32 %v14, %v24
  %v27 = vsub.f32 %v15, %v25
  %v28 = vmul.f32 %v26, %v26
  %v29 = vmul.f32 %v27, %v27
  %v30 = vsel %vm16, %v28, 0.0
  %31 = vadd.xlane.f32.xlu0 %v30
  %v32 = vpop.xlane.xlu0 %31
  %v33 = vsel %vm16, %v29, 0.0
  %34 = vadd.xlane.f32.xlu0 %v33
  %v35 = vpop.xlane.xlu0 %34
  %v36 = vmul.f32 %v32, %v23
  %v37 = vmul.f32 %v35, %v23
  %v38 = vadd.f32 %v36, 1e-12
  %v39 = vadd.f32 %v37, 1e-12
  %v40 = vrsqrt.pop %v38
  %v41 = vrsqrt.pop %v39
  %v42 = vmul.f32 %v26, %v40
  %v43 = vmul.f32 %v27, %v41
  %v44 = vld [vmem:[%s1] sm:$0x1]
  %v46 = vlaneseq
  %v47 = vshrl.u32 %v46, 7
  %v48 = vsub.s32 0, %v47
  %v49 = vrot.slane %v44, %v48
  %v51 = vmul.f32 %v42, %v49
  %v52 = vmul.f32 %v43, %v49
  %v53 = vld [vmem:[%s2] sm:$0x1]
  %v55 = vlaneseq
  %v56 = vshrl.u32 %v55, 7
  %v57 = vsub.s32 0, %v56
  %v58 = vrot.slane %v53, %v57
  %v60 = vadd.f32 %v51, %v58
  %v61 = vadd.f32 %v52, %v58
  %v62 = vpack.c.bf16 %v61, %v60
  %v64 = vunpack.c.l.b16 %v62
  %v65 = vunpack.c.h.b16 %v62
  %v66 = vpack.c.b16 %v64, %v64
  %v67 = vpack.c.b16 %v65, %v65
  %vm70 = vcmask 257024
  %71 = vst.msk [vmem:[%s3] sm:$0xf] %vm70, %v66
  %72 = vst.msk [vmem:[%s3 + $0x4] sm:$0xf] %vm70, %v67
  // Predicated region
  $region14: #{_lambda_.12} parent=0 // pred_check
    _
  $region15: #{_lambda_.12} parent=0 // pred_check_branch
    %74 = sbr.rel (0) target = $region17
  $region16: #{_lambda_.12} parent=0 // pred_region
    _
  $region17: #{_lambda_.12} parent=0 // pred_fallthru
    _
  // Predicated region
  $region18: #{_lambda_.12} parent=0 // pred_check
    _
  $region19: #{_lambda_.12} parent=0 // pred_check_branch
    %76 = sbr.rel (0) target = $region21
  $region20: #{_lambda_.12} parent=0 // pred_region
    _
  $region21: #{_lambda_.12} parent=0 // pred_fallthru
    _

// kernel: _lambda_.15
$region0: #{_lambda_.15}
  #allocation0 [shape = 'u32[]', space=smem, size = 0x4, offset = 0x4, fixed_abs, tag = 'smem constant byte address 0x4 - core index']
  #allocation1 [shape = 'u32[144,128]{1,0:T(1,128)}', space=vmem, size = 0x12000, scoped, tag = 'internal scratch']
  %s0 = inlined_call_operand.vmem [shape: bf16[16,32], index: 0, kind: input, shape index: {}]
  %s1 = inlined_call_operand.vmem [shape: bf16[32,32], index: 1, kind: input, shape index: {}]
  %s2 = inlined_call_operand.vmem [shape: f32[1,32], index: 2, kind: input, shape index: {}]
  %s3 = inlined_call_operand.vmem [shape: bf16[16,32], index: 3, kind: input, shape index: {}]
  %s4 = inlined_call_operand.vmem [shape: f32[1,32], index: 4, kind: input, shape index: {}]
  %s5 = inlined_call_operand.vmem [shape: f32[1,32], index: 5, kind: input, shape index: {}]
  %s6 = inlined_call_operand.vmem [shape: bf16[16,32], index: 6, kind: output, shape index: {}]
  %s7 = sld [smem:[#allocation0]]
  $region34: #{_lambda_.15} parent=0
    _
  %s9 = ssub.s32 1, %s7
  %s10 = scalar_select 0, %s9, %s7
  // Predicated region
  $region2: #{_lambda_.15} parent=0 // pred_check
    _
  $region3: #{_lambda_.15} parent=0 // pred_check_branch
    %12 = sbr.rel (0) target = $region5
  $region4: #{_lambda_.15} parent=0 // pred_region
    _
  $region5: #{_lambda_.15} parent=0 // pred_fallthru
    _
  // Predicated region
  $region6: #{_lambda_.15} parent=0 // pred_check
    _
  $region7: #{_lambda_.15} parent=0 // pred_check_branch
    %14 = sbr.rel (0) target = $region9
  $region8: #{_lambda_.15} parent=0 // pred_region
    _
  $region9: #{_lambda_.15} parent=0 // pred_fallthru
    _
  // Predicated region
  $region10: #{_lambda_.15} parent=0 // pred_check
    _
  $region11: #{_lambda_.15} parent=0 // pred_check_branch
    %16 = sbr.rel (0) target = $region13
  $region12: #{_lambda_.15} parent=0 // pred_region
    _
  $region13: #{_lambda_.15} parent=0 // pred_fallthru
    _
  // Predicated region
  $region14: #{_lambda_.15} parent=0 // pred_check
    _
  $region15: #{_lambda_.15} parent=0 // pred_check_branch
    %18 = sbr.rel (0) target = $region17
  $region16: #{_lambda_.15} parent=0 // pred_region
    _
  $region17: #{_lambda_.15} parent=0 // pred_fallthru
    _
  // Predicated region
  $region18: #{_lambda_.15} parent=0 // pred_check
    _
  $region19: #{_lambda_.15} parent=0 // pred_check_branch
    %20 = sbr.rel (0) target = $region21
  $region20: #{_lambda_.15} parent=0 // pred_region
    _
  $region21: #{_lambda_.15} parent=0 // pred_fallthru
    _
  // Predicated region
  $region22: #{_lambda_.15} parent=0 // pred_check
    _
  $region23: #{_lambda_.15} parent=0 // pred_check_branch
    %22 = sbr.rel (0) target = $region25
  $region24: #{_lambda_.15} parent=0 // pred_region
    _
  $region25: #{_lambda_.15} parent=0 // pred_fallthru
    _
  %v24 = vld [vmem:[%s0] sm:$0xf]
  %v25 = vld [vmem:[%s0 + $0x4] sm:$0xf]
  %v26 = vld [vmem:[%s1] sm:$0xf]
  %v27 = vld [vmem:[%s1 + $0x4] sm:$0xf]
  %v28 = vld [vmem:[%s1 + $0x8] sm:$0xf]
  %v29 = vld [vmem:[%s1 + $0xc] sm:$0xf]
  %v30 = vld [vmem:[%s2] sm:$0x1]
  %v32 = vlaneseq
  %v33 = vshrl.u32 %v32, 7
  %v34 = vsub.s32 0, %v33
  %v35 = vrot.slane %v30, %v34
  %v39 = vunpack.c.l.b16 %v24
  %v40 = vunpack.c.l.b16 %v25
  %v41 = vpack.c.b16 %v40, %v39
  %v46 = vunpack.c.l.b16 %v26
  %v47 = vunpack.c.l.b16 %v27
  %v48 = vunpack.c.l.b16 %v28
  %v49 = vunpack.c.l.b16 %v29
  %v50 = vpack.c.b16 %v47, %v46
  %v51 = vpack.c.b16 %v49, %v48
  %vm54 = vcmask 261120
  %v56 = vsel %vm54, %v41, 0
  %58 = vmatprep.subr.bf16.mxu0 0
  %59 = vmatpush1.bf16.msra.mxu0 %v50
  %60 = vmatprep.subr.bf16.mxu0 0
  %61 = vmatpush1.bf16.msra.mxu0 %v51
  %62 = vmatprep.subr.bf16.mxu0 0
  %63 = vmatpush1.bf16.msra.mxu0 0
  %64 = vmatprep.subr.bf16.mxu0 0
  %65 = vmatpush1.bf16.msra.mxu0 0
  %66 = vmatprep.subr.bf16.mxu0 0
  %67 = vmatpush1.bf16.msra.mxu0 0
  %68 = vmatprep.subr.bf16.mxu0 0
  %69 = vmatpush1.bf16.msra.mxu0 0
  %70 = vmatprep.subr.bf16.mxu0 0
  %71 = vmatpush1.bf16.msra.mxu0 0
  %72 = vmatprep.subr.bf16.mxu0 0
  %73 = vmatpush1.bf16.msra.mxu0 0
  %74 = vmatprep.subr.bf16.mxu0 0
  %75 = vmatpush1.bf16.msra.mxu0 0
  %76 = vmatprep.subr.bf16.mxu0 0
  %77 = vmatpush1.bf16.msra.mxu0 0
  %78 = vmatprep.subr.bf16.mxu0 0
  %79 = vmatpush1.bf16.msra.mxu0 0
  %80 = vmatprep.subr.bf16.mxu0 0
  %81 = vmatpush1.bf16.msra.mxu0 0
  %82 = vmatprep.subr.bf16.mxu0 0
  %83 = vmatpush1.bf16.msra.mxu0 0
  %84 = vmatprep.subr.bf16.mxu0 0
  %85 = vmatpush1.bf16.msra.mxu0 0
  %86 = vmatprep.subr.bf16.mxu0 0
  %87 = vmatpush1.bf16.msra.mxu0 0
  %88 = vmatprep.subr.bf16.mxu0 0
  %89 = vmatpush1.bf16.msra.mxu0 0
  %90 = vmatprep.mubr.bf16.mxu0 0
  %91 = vmatmul.mubr.bf16.gmra.mrb[0].mxu0 %v56
  %v92 = vpop.f32.mrb[0].mxu0
  %v93 = vadd.f32 %v35, %v92
  %v94 = vpop.f32.mrb[0].mxu0
  %v95 = vpop.f32.mrb[0].mxu0
  %v96 = vadd.f32 %v35, %v95
  %v97 = vpop.f32.mrb[0].mxu0
  %98 = vdwg.mxu0
  %v99 = vld [vmem:[%s3] sm:$0xf]
  %v100 = vld [vmem:[%s3 + $0x4] sm:$0xf]
  %v101 = vunpack.c.l.bf16 %v99
  %v102 = vunpack.c.l.bf16 %v100
  %v103 = vadd.f32 %v93, %v101
  %v104 = vadd.f32 %v96, %v102
  %v105 = vsel %vm54, %v103, 0.0
  %106 = vadd.xlane.f32.xlu0 %v105
  %v107 = vpop.xlane.xlu0 %106
  %v108 = vsel %vm54, %v104, 0.0
  %109 = vadd.xlane.f32.xlu0 %v108
  %v110 = vpop.xlane.xlu0 %109
  %v111 = vrcp.pop 32.0
  %v112 = vmul.f32 %v107, %v111
  %v113 = vmul.f32 %v110, %v111
  %v114 = vsub.f32 %v103, %v112
  %v115 = vsub.f32 %v104, %v113
  %v116 = vmul.f32 %v114, %v114
  %v117 = vmul.f32 %v115, %v115
  %v118 = vsel %vm54, %v116, 0.0
  %119 = vadd.xlane.f32.xlu0 %v118
  %v120 = vpop.xlane.xlu0 %119
  %v121 = vsel %vm54, %v117, 0.0
  %122 = vadd.xlane.f32.xlu0 %v121
  %v123 = vpop.xlane.xlu0 %122
  %v124 = vmul.f32 %v120, %v111
  %v125 = vmul.f32 %v123, %v111
  %v126 = vadd.f32 %v124, 1e-12
  %v127 = vadd.f32 %v125, 1e-12
  %v128 = vrsqrt.pop %v126
  %v129 = vrsqrt.pop %v127
  %v130 = vmul.f32 %v114, %v128
  %v131 = vmul.f32 %v115, %v129
  %v132 = vld [vmem:[%s4] sm:$0x1]
  %v134 = vlaneseq
  %v135 = vshrl.u32 %v134, 7
  %v136 = vsub.s32 0, %v135
  %v137 = vrot.slane %v132, %v136
  %v139 = vmul.f32 %v130, %v137
  %v140 = vmul.f32 %v131, %v137
  %v141 = vld [vmem:[%s5] sm:$0x1]
  %v143 = vlaneseq
  %v144 = vshrl.u32 %v143, 7
  %v145 = vsub.s32 0, %v144
  %v146 = vrot.slane %v141, %v145
  %v148 = vadd.f32 %v139, %v146
  %v149 = vadd.f32 %v140, %v146
  %v150 = vpack.c.bf16 %v149, %v148
  %v152 = vunpack.c.l.b16 %v150
  %v153 = vunpack.c.h.b16 %v150
  %v154 = vpack.c.b16 %v152, %v152
  %v155 = vpack.c.b16 %v153, %v153
  %vm158 = vcmask 257024
  %159 = vst.msk [vmem:[%s6] sm:$0xf] %vm158, %v154
  %160 = vst.msk [vmem:[%s6 + $0x4] sm:$0xf] %vm158, %v155
  // Predicated region
  $region26: #{_lambda_.15} parent=0 // pred_check
    _
  $region27: #{_lambda_.15} parent=0 // pred_check_branch
    %162 = sbr.rel (0) target = $region29
  $region28: #{_lambda_.15} parent=0 // pred_region
    _
  $region29: #{_lambda_.15} parent=0 // pred_fallthru
    _
  // Predicated region
  $region30: #{_lambda_.15} parent=0 // pred_check
    _
  $region31: #{_lambda_.15} parent=0 // pred_check_branch
    %164 = sbr.rel (0) target = $region33
  $region32: #{_lambda_.15} parent=0 // pred_region
    _
  $region33: #{_lambda_.15} parent=0 // pred_fallthru
    _

// kernel: _lambda_.14
$region0: #{_lambda_.14}
  #allocation0 [shape = 'u32[]', space=smem, size = 0x4, offset = 0x4, fixed_abs, tag = 'smem constant byte address 0x4 - core index']
  #allocation1 [shape = 'u32[144,128]{1,0:T(1,128)}', space=vmem, size = 0x12000, scoped, tag = 'internal scratch']
  #allocation2 [shape = 'f32[8,1]{1,0:T(8,128)}', space=vmem, size = 0x1000, scoped, tag = 'scratch operand']
  #allocation3 [shape = 'f32[8,1]{1,0:T(8,128)}', space=vmem, size = 0x1000, scoped, tag = 'scratch operand']
  #allocation4 [shape = 'f32[8,8]{1,0:T(8,128)}', space=vmem, size = 0x1000, scoped, tag = 'scratch operand']
  %s0 = inlined_call_operand.vmem [shape: bf16[2,4,8,8], index: 0, kind: input, shape index: {}]
  %s1 = inlined_call_operand.vmem [shape: bf16[2,4,8,8], index: 1, kind: input, shape index: {}]
  %s2 = inlined_call_operand.vmem [shape: bf16[2,4,8,8], index: 2, kind: input, shape index: {}]
  %s3 = inlined_call_operand.vmem [shape: f32[2,1,8], index: 3, kind: input, shape index: {}]
  %s4 = inlined_call_operand.vmem [shape: bf16[2,4,8,8], index: 4, kind: output, shape index: {}]
  %s5 = sld [smem:[#allocation0]]
  $region57: #{_lambda_.14} parent=0
    _
  %s7 = ssub.s32 1, %s5
  %s8 = scalar_select 0, %s7, %s5
  loop: start=0, step=1, limit=10
  $region2: #{_lambda_.14} parent=0 // loop_pre_header
    _
  $region3: #{_lambda_.14} parent=0 // loop_header
    %s10 = sphi 0, %s14
    %p11 = scmp.ge.s32.totalorder %s10, 10
    %s17 = sphi 0, %s43
    %s18 = sphi 0, %s39
    %s19 = sphi 0, %s35
    %s20 = sphi 0, %s31
    %s21 = sphi 0, %s17
    %s22 = sphi 0, %s18
    %s23 = sphi 0, %s19
    %s24 = sphi 0, %s20
    %s25 = sphi 0, %s21
    %s26 = sphi 0, %s22
    %s27 = sphi 0, %s23
    %s28 = sphi 0, %s24
    %s50 = sphi 0, %s52
    %s53 = sphi 0, %s50
    %s54 = sphi 0, %s53
    %s70 = sphi 0, %s54
    %s80 = sphi 0, %s82
    %s83 = sphi 0, %s80
    %s84 = sphi 0, %s83
    %s100 = sphi 0, %s84
    %s110 = sphi 0, %s112
    %s113 = sphi 0, %s110
    %s114 = sphi 0, %s113
    %s130 = sphi 0, %s114
    %s138 = sphi 0, %s140
    %s141 = sphi 0, %s138
    %s142 = sphi 0, %s141
    %s158 = sphi 0, %s142
    %s168 = sphi 0, %s170
    %s171 = sphi 0, %s168
    %s172 = sphi 0, %s171
    %s188 = sphi 0, %s172
  $region4: #{_lambda_.14} parent=0 // loop_header_branch
    %13 = sbr.rel (%p11) target = $region8
  $region5: #{_lambda_.14} parent=0 // loop_body
    %s15 = ssub.s32 %s10, 1
    %s16 = ssub.s32 %s10, 2
    %s29 = sadd.s32 1, %s20
    %p30 = scmp.ge.s32.totalorder %s29, 1
    %s31 = scalar_select %p30, 0, %s29
    %s32 = sadd.s32 1, %s19
    %s33 = scalar_select %p30, %s32, %s19
    %p34 = scmp.ge.s32.totalorder %s33, 1
    %s35 = scalar_select %p34, 0, %s33
    %s36 = sadd.s32 1, %s18
    %s37 = scalar_select %p34, %s36, %s18
    %p38 = scmp.ge.s32.totalorder %s37, 4
    %s39 = scalar_select %p38, 0, %s37
    %s40 = sadd.s32 1, %s17
    %s41 = scalar_select %p38, %s40, %s17
    %p42 = scmp.ge.s32.totalorder %s41, 2
    %s43 = scalar_select %p42, 0, %s41
    %s44 = ssub.s32 %s17, %s43
    %s45 = ssub.s32 %s18, %s39
    %s46 = sor.u32 %s44, %s45
    %s47 = ssub.s32 %s19, %s35
    %s48 = sor.u32 %s46, %s47
    %p49 = scmp.eq.s32.totalorder %s48, 0
    %s51 = sadd.s32 %s50, 1
    %s52 = scalar_select %p49, %s50, %s51
    %p55 = pneg %p49
    %p56 = scmp.eq.s32.totalorder %s10, 7
    %p57 = por %p55, %p56
    %p58 = scmp.ne.s32.totalorder %s50, %s53
    %p59 = scmp.eq.s32.totalorder %s10, 0
    %p60 = por %p58, %p59
    %p61 = scmp.ne.s32.totalorder %s50, %s53
    %p62 = scmp.eq.s32.totalorder %s15, 7
    %p63 = por %p61, %p62
    %p64 = scmp.ne.s32.totalorder %s53, %s54
    %p65 = scmp.eq.s32.totalorder %s15, 0
    %p66 = por %p64, %p65
    %p67 = scmp.ne.s32.totalorder %s53, %s54
    %p68 = scmp.eq.s32.totalorder %s16, 7
    %p69 = por %p67, %p68
    %p71 = scmp.ne.s32.totalorder %s54, %s70
    %p72 = scmp.eq.s32.totalorder %s16, 0
    %p73 = por %p71, %p72
    %s74 = ssub.s32 %s17, %s43
    %s75 = ssub.s32 %s18, %s39
    %s76 = sor.u32 %s74, %s75
    %s77 = ssub.s32 %s20, %s31
    %s78 = sor.u32 %s76, %s77
    %p79 = scmp.eq.s32.totalorder %s78, 0
    %s81 = sadd.s32 %s80, 1
    %s82 = scalar_select %p79, %s80, %s81
    %p85 = pneg %p79
    %p86 = scmp.eq.s32.totalorder %s10, 7
    %p87 = por %p85, %p86
    %p88 = scmp.ne.s32.totalorder %s80, %s83
    %p89 = scmp.eq.s32.totalorder %s10, 0
    %p90 = por %p88, %p89
    %p91 = scmp.ne.s32.totalorder %s80, %s83
    %p92 = scmp.eq.s32.totalorder %s15, 7
    %p93 = por %p91, %p92
    %p94 = scmp.ne.s32.totalorder %s83, %s84
    %p95 = scmp.eq.s32.totalorder %s15, 0
    %p96 = por %p94, %p95
    %p97 = scmp.ne.s32.totalorder %s83, %s84
    %p98 = scmp.eq.s32.totalorder %s16, 7
    %p99 = por %p97, %p98
    %p101 = scmp.ne.s32.totalorder %s84, %s100
    %p102 = scmp.eq.s32.totalorder %s16, 0
    %p103 = por %p101, %p102
    %s104 = ssub.s32 %s17, %s43
    %s105 = ssub.s32 %s18, %s39
    %s106 = sor.u32 %s104, %s105
    %s107 = ssub.s32 %s20, %s31
    %s108 = sor.u32 %s106, %s107
    %p109 = scmp.eq.s32.totalorder %s108, 0
    %s111 = sadd.s32 %s110, 1
    %s112 = scalar_select %p109, %s110, %s111
    %p115 = pneg %p109
    %p116 = scmp.eq.s32.totalorder %s10, 7
    %p117 = por %p115, %p116
    %p118 = scmp.ne.s32.totalorder %s110, %s113
    %p119 = scmp.eq.s32.totalorder %s10, 0
    %p120 = por %p118, %p119
    %p121 = scmp.ne.s32.totalorder %s110, %s113
    %p122 = scmp.eq.s32.totalorder %s15, 7
    %p123 = por %p121, %p122
    %p124 = scmp.ne.s32.totalorder %s113, %s114
    %p125 = scmp.eq.s32.totalorder %s15, 0
    %p126 = por %p124, %p125
    %p127 = scmp.ne.s32.totalorder %s113, %s114
    %p128 = scmp.eq.s32.totalorder %s16, 7
    %p129 = por %p127, %p128
    %p131 = scmp.ne.s32.totalorder %s114, %s130
    %p132 = scmp.eq.s32.totalorder %s16, 0
    %p133 = por %p131, %p132
    %s134 = ssub.s32 %s17, %s43
    %s135 = ssub.s32 %s20, %s31
    %s136 = sor.u32 %s134, %s135
    %p137 = scmp.eq.s32.totalorder %s136, 0
    %s139 = sadd.s32 %s138, 1
    %s140 = scalar_select %p137, %s138, %s139
    %p143 = pneg %p137
    %p144 = scmp.eq.s32.totalorder %s10, 7
    %p145 = por %p143, %p144
    %p146 = scmp.ne.s32.totalorder %s138, %s141
    %p147 = scmp.eq.s32.totalorder %s10, 0
    %p148 = por %p146, %p147
    %p149 = scmp.ne.s32.totalorder %s138, %s141
    %p150 = scmp.eq.s32.totalorder %s15, 7
    %p151 = por %p149, %p150
    %p152 = scmp.ne.s32.totalorder %s141, %s142
    %p153 = scmp.eq.s32.totalorder %s15, 0
    %p154 = por %p152, %p153
    %p155 = scmp.ne.s32.totalorder %s141, %s142
    %p156 = scmp.eq.s32.totalorder %s16, 7
    %p157 = por %p155, %p156
    %p159 = scmp.ne.s32.totalorder %s142, %s158
    %p160 = scmp.eq.s32.totalorder %s16, 0
    %p161 = por %p159, %p160
    %s162 = ssub.s32 %s17, %s43
    %s163 = ssub.s32 %s18, %s39
    %s164 = sor.u32 %s162, %s163
    %s165 = ssub.s32 %s19, %s35
    %s166 = sor.u32 %s164, %s165
    %p167 = scmp.eq.s32.totalorder %s166, 0
    %s169 = sadd.s32 %s168, 1
    %s170 = scalar_select %p167, %s168, %s169
    %p173 = pneg %p167
    %p174 = scmp.eq.s32.totalorder %s10, 7
    %p175 = por %p173, %p174
    %p176 = scmp.ne.s32.totalorder %s168, %s171
    %p177 = scmp.eq.s32.totalorder %s10, 0
    %p178 = por %p176, %p177
    %p179 = scmp.ne.s32.totalorder %s168, %s171
    %p180 = scmp.eq.s32.totalorder %s15, 7
    %p181 = por %p179, %p180
    %p182 = scmp.ne.s32.totalorder %s171, %s172
    %p183 = scmp.eq.s32.totalorder %s15, 0
    %p184 = por %p182, %p183
    %p185 = scmp.ne.s32.totalorder %s171, %s172
    %p186 = scmp.eq.s32.totalorder %s16, 7
    %p187 = por %p185, %p186
    %p189 = scmp.ne.s32.totalorder %s172, %s188
    %p190 = scmp.eq.s32.totalorder %s16, 0
    %p191 = por %p189, %p190
    %p192 = scmp.le.s32.totalorder 1, %s10
    %p193 = scmp.lt.s32.totalorder %s10, 9
    %p194 = pnand %p192, %p193
    %p195 = pneg %p194
    // Predicated region
    $region9: #{_lambda_.14} parent=5 // pred_check
      _
    $region10: #{_lambda_.14} parent=5 // pred_check_branch
      %197 = sbr.rel (%p194) target = $region12
    $region11: #{_lambda_.14} parent=5 // pred_region
      %s198 = ssub.s32 %s10, 1
    $region12: #{_lambda_.14} parent=5 // pred_fallthru
      _
    %p199 = scmp.lt.s32.totalorder %s10, 8
    // Predicated region
    $region13: #{_lambda_.14} parent=5 // pred_check
      %p200 = pneg %p199
    $region14: #{_lambda_.14} parent=5 // pred_check_branch
      %202 = sbr.rel (%p200) target = $region16
    $region15: #{_lambda_.14} parent=5 // pred_region
      // Predicated region
      $region17: #{_lambda_.14} parent=15 // pred_check
        %p203 = pneg %p60
      $region18: #{_lambda_.14} parent=15 // pred_check_branch
        %205 = sbr.rel (%p203) target = $region20
      $region19: #{_lambda_.14} parent=15 // pred_region
        %p206 = scmp.lt.s32.totalorder %s17, 1
        %s207 = scalar_select %p206, %s17, 1
        %p208 = scmp.lt.s32.totalorder %s18, 3
        %s209 = scalar_select %p208, %s18, 3
        %p210 = scmp.lt.s32.totalorder %s19, 0
        %s211 = scalar_select %p210, %s19, 0
        %s212 = sadd.s32 %s211, %s209
        %s213 = smul.addr %s207, 4
        %s214 = sadd.s32 %s212, %s213
        %s215 = smul.addr %s214, 4
        %s216 = scalar_lea.vmem %s0, %s215
      $region20: #{_lambda_.14} parent=15 // pred_fallthru
        _
      // Predicated region
      $region21: #{_lambda_.14} parent=15 // pred_check
        %p217 = pneg %p90
      $region22: #{_lambda_.14} parent=15 // pred_check_branch
        %219 = sbr.rel (%p217) target = $region24
      $region23: #{_lambda_.14} parent=15 // pred_region
        %p220 = scmp.lt.s32.totalorder %s17, 1
        %s221 = scalar_select %p220, %s17, 1
        %p222 = scmp.lt.s32.totalorder %s18, 3
        %s223 = scalar_select %p222, %s18, 3
        %p224 = scmp.lt.s32.totalorder %s20, 0
        %s225 = scalar_select %p224, %s20, 0
        %s226 = sadd.s32 %s225, %s223
        %s227 = smul.addr %s221, 4
        %s228 = sadd.s32 %s226, %s227
        %s229 = smul.addr %s228, 4
        %s230 = scalar_lea.vmem %s1, %s229
      $region24: #{_lambda_.14} parent=15 // pred_fallthru
        _
      // Predicated region
      $region25: #{_lambda_.14} parent=15 // pred_check
        %p231 = pneg %p120
      $region26: #{_lambda_.14} parent=15 // pred_check_branch
        %233 = sbr.rel (%p231) target = $region28
      $region27: #{_lambda_.14} parent=15 // pred_region
        %p234 = scmp.lt.s32.totalorder %s17, 1
        %s235 = scalar_select %p234, %s17, 1
        %p236 = scmp.lt.s32.totalorder %s18, 3
        %s237 = scalar_select %p236, %s18, 3
        %p238 = scmp.lt.s32.totalorder %s20, 0
        %s239 = scalar_select %p238, %s20, 0
        %s240 = sadd.s32 %s239, %s237
        %s241 = smul.addr %s235, 4
        %s242 = sadd.s32 %s240, %s241
        %s243 = smul.addr %s242, 4
        %s244 = scalar_lea.vmem %s2, %s243
      $region28: #{_lambda_.14} parent=15 // pred_fallthru
        _
      // Predicated region
      $region29: #{_lambda_.14} parent=15 // pred_check
        %p245 = pneg %p148
      $region30: #{_lambda_.14} parent=15 // pred_check_branch
        %247 = sbr.rel (%p245) target = $region32
      $region31: #{_lambda_.14} parent=15 // pred_region
        %p248 = scmp.lt.s32.totalorder %s17, 1
        %s249 = scalar_select %p248, %s17, 1
        %p250 = scmp.lt.s32.totalorder %s20, 0
        %s251 = scalar_select %p250, %s20, 0
        %s252 = sadd.s32 %s251, %s249
        %s253 = scalar_lea.vmem %s3, %s252
      $region32: #{_lambda_.14} parent=15 // pred_fallthru
        _
    $region16: #{_lambda_.14} parent=5 // pred_fallthru
      _
    %p254 = scmp.le.s32.totalorder 1, %s10
    %p255 = scmp.lt.s32.totalorder %s10, 9
    %p256 = pnand %p254, %p255
    %p257 = pneg %p256
    // Predicated region
    $region33: #{_lambda_.14} parent=5 // pred_check
      _
    $region34: #{_lambda_.14} parent=5 // pred_check_branch
      %259 = sbr.rel (%p256) target = $region36
    $region35: #{_lambda_.14} parent=5 // pred_region
      %s260 = ssub.s32 %s10, 1
      %p261 = scmp.lt.s32.totalorder %s21, 1
      %s262 = scalar_select %p261, %s21, 1
      %p263 = scmp.lt.s32.totalorder %s22, 3
      %s264 = scalar_select %p263, %s22, 3
      %p265 = scmp.lt.s32.totalorder %s23, 0
      %s266 = scalar_select %p265, %s23, 0
      %s267 = sadd.s32 %s266, %s264
      %s268 = smul.addr %s262, 4
      %s269 = sadd.s32 %s267, %s268
      %s270 = smul.addr %s269, 4
      %s271 = scalar_lea.vmem %s0, %s270
      %p272 = pneg %p66
      %p273 = pneg %p63
      %p274 = scmp.lt.s32.totalorder %s21, 1
      %s275 = scalar_select %p274, %s21, 1
      %p276 = scmp.lt.s32.totalorder %s22, 3
      %s277 = scalar_select %p276, %s22, 3
      %p278 = scmp.lt.s32.totalorder %s24, 0
      %s279 = scalar_select %p278, %s24, 0
      %s280 = sadd.s32 %s279, %s277
      %s281 = smul.addr %s275, 4
      %s282 = sadd.s32 %s280, %s281
      %s283 = smul.addr %s282, 4
      %s284 = scalar_lea.vmem %s1, %s283
      %p285 = pneg %p96
      %p286 = pneg %p93
      %p287 = scmp.lt.s32.totalorder %s21, 1
      %s288 = scalar_select %p287, %s21, 1
      %p289 = scmp.lt.s32.totalorder %s22, 3
      %s290 = scalar_select %p289, %s22, 3
      %p291 = scmp.lt.s32.totalorder %s24, 0
      %s292 = scalar_select %p291, %s24, 0
      %s293 = sadd.s32 %s292, %s290
      %s294 = smul.addr %s288, 4
      %s295 = sadd.s32 %s293, %s294
      %s296 = smul.addr %s295, 4
      %s297 = scalar_lea.vmem %s2, %s296
      %p298 = pneg %p126
      %p299 = pneg %p123
      %p300 = scmp.lt.s32.totalorder %s21, 1
      %s301 = scalar_select %p300, %s21, 1
      %p302 = scmp.lt.s32.totalorder %s24, 0
      %s303 = scalar_select %p302, %s24, 0
      %s304 = sadd.s32 %s303, %s301
      %s305 = scalar_lea.vmem %s3, %s304
      %p306 = pneg %p154
      %p307 = pneg %p151
      %p308 = pneg %p184
      %p309 = pneg %p181
      %p310 = scmp.lt.s32.totalorder %s21, 1
      %s311 = scalar_select %p310, %s21, 1
      %p312 = scmp.lt.s32.totalorder %s22, 3
      %s313 = scalar_select %p312, %s22, 3
      %p314 = scmp.lt.s32.totalorder %s23, 0
      %s315 = scalar_select %p314, %s23, 0
      %s316 = sadd.s32 %s315, %s313
      %s317 = smul.addr %s311, 4
      %s318 = sadd.s32 %s316, %s317
      %s319 = smul.addr %s318, 4
      %s320 = scalar_lea.vmem %s4, %s319
      %p321 = scmp.lt.s32.totalorder %s21, 1
      %s322 = scalar_select %p321, %s21, 1
      %p323 = scmp.lt.s32.totalorder %s22, 3
      %s324 = scalar_select %p323, %s22, 3
      %p325 = scmp.lt.s32.totalorder %s23, 0
      %s326 = scalar_select %p325, %s23, 0
      %s327 = sadd.s32 %s326, %s324
      %s328 = smul.addr %s322, 4
      %s329 = sadd.s32 %s327, %s328
      %s330 = smul.addr %s329, 4
      %s331 = scalar_lea.vmem %s0, %s330
      %p332 = scmp.lt.s32.totalorder %s21, 1
      %s333 = scalar_select %p332, %s21, 1
      %p334 = scmp.lt.s32.totalorder %s22, 3
      %s335 = scalar_select %p334, %s22, 3
      %p336 = scmp.lt.s32.totalorder %s24, 0
      %s337 = scalar_select %p336, %s24, 0
      %s338 = sadd.s32 %s337, %s335
      %s339 = smul.addr %s333, 4
      %s340 = sadd.s32 %s338, %s339
      %s341 = smul.addr %s340, 4
      %s342 = scalar_lea.vmem %s1, %s341
      %p343 = scmp.lt.s32.totalorder %s21, 1
      %s344 = scalar_select %p343, %s21, 1
      %p345 = scmp.lt.s32.totalorder %s22, 3
      %s346 = scalar_select %p345, %s22, 3
      %p347 = scmp.lt.s32.totalorder %s24, 0
      %s348 = scalar_select %p347, %s24, 0
      %s349 = sadd.s32 %s348, %s346
      %s350 = smul.addr %s344, 4
      %s351 = sadd.s32 %s349, %s350
      %s352 = smul.addr %s351, 4
      %s353 = scalar_lea.vmem %s2, %s352
      %p354 = scmp.lt.s32.totalorder %s21, 1
      %s355 = scalar_select %p354, %s21, 1
      %p356 = scmp.lt.s32.totalorder %s24, 0
      %s357 = scalar_select %p356, %s24, 0
      %s358 = sadd.s32 %s357, %s355
      %s359 = scalar_lea.vmem %s3, %s358
      %p360 = scmp.lt.s32.totalorder %s21, 1
      %s361 = scalar_select %p360, %s21, 1
      %p362 = scmp.lt.s32.totalorder %s22, 3
      %s363 = scalar_select %p362, %s22, 3
      %p364 = scmp.lt.s32.totalorder %s23, 0
      %s365 = scalar_select %p364, %s23, 0
      %s366 = sadd.s32 %s365, %s363
      %s367 = smul.addr %s361, 4
      %s368 = sadd.s32 %s366, %s367
      %s369 = smul.addr %s368, 4
      %s370 = scalar_lea.vmem %s4, %s369
      %p372 = scmp.eq.s32.totalorder %s24, 0
      // Predicated region
      $region37: #{_lambda_.14} parent=35 // pred_check
        %p373 = pneg %p372
      $region38: #{_lambda_.14} parent=35 // pred_check_branch
        %375 = sbr.rel (%p373) target = $region40
      $region39: #{_lambda_.14} parent=35 // pred_region
        %vm376 = vcmask 7168
        %377 = vst.msk [vmem:[#allocation2] sm:$0xff] %vm376, -inf
        %378 = vst.msk [vmem:[#allocation3] sm:$0xff] %vm376, 0.0
        %vm379 = vcmask 64512
        %380 = vst.msk [vmem:[#allocation4] sm:$0xff] %vm379, 0.0
      $region40: #{_lambda_.14} parent=35 // pred_fallthru
        _
      %v381 = vld [vmem:[%s331] sm:$0xf]
      %v382 = vld [vmem:[%s342] sm:$0xf]
      %v383 = vld [vmem:[%s353] sm:$0xf]
      %v384 = vld [vmem:[%s359] sm:$0x1]
      %v386 = vlaneseq
      %v387 = vshrl.u32 %v386, 7
      %v388 = vsub.s32 0, %v387
      %v389 = vrot.slane %v384, %v388
      %vm391 = vcmask 64512
      %v393 = vsel %vm391, %v381, 0
      %v396 = vsel %vm391, %v382, 0
      %398 = vmatprep.subr.bf16.mxu0 0
      %399 = vmatpush1.bf16.xpose.msra.mxu0 %v396
      %400 = vmatprep.subr.bf16.mxu0 0
      %401 = vmatpush1.bf16.xpose.msra.mxu0 0
      %402 = vmatprep.subr.bf16.mxu0 0
      %403 = vmatpush1.bf16.xpose.msra.mxu0 0
      %404 = vmatprep.subr.bf16.mxu0 0
      %405 = vmatpush1.bf16.xpose.msra.mxu0 0
      %406 = vmatprep.subr.bf16.mxu0 0
      %407 = vmatpush1.bf16.xpose.msra.mxu0 0
      %408 = vmatprep.subr.bf16.mxu0 0
      %409 = vmatpush1.bf16.xpose.msra.mxu0 0
      %410 = vmatprep.subr.bf16.mxu0 0
      %411 = vmatpush1.bf16.xpose.msra.mxu0 0
      %412 = vmatprep.subr.bf16.mxu0 0
      %413 = vmatpush1.bf16.xpose.msra.mxu0 0
      %414 = vmatprep.subr.bf16.mxu0 0
      %415 = vmatpush1.bf16.xpose.msra.mxu0 0
      %416 = vmatprep.subr.bf16.mxu0 0
      %417 = vmatpush1.bf16.xpose.msra.mxu0 0
      %418 = vmatprep.subr.bf16.mxu0 0
      %419 = vmatpush1.bf16.xpose.msra.mxu0 0
      %420 = vmatprep.subr.bf16.mxu0 0
      %421 = vmatpush1.bf16.xpose.msra.mxu0 0
      %422 = vmatprep.subr.bf16.mxu0 0
      %423 = vmatpush1.bf16.xpose.msra.mxu0 0
      %424 = vmatprep.subr.bf16.mxu0 0
      %425 = vmatpush1.bf16.xpose.msra.mxu0 0
      %426 = vmatprep.subr.bf16.mxu0 0
      %427 = vmatpush1.bf16.xpose.msra.mxu0 0
      %428 = vmatprep.subr.bf16.mxu0 0
      %429 = vmatpush1.bf16.xpose.msra.mxu0 0
      %430 = vmatprep.mubr.bf16.mxu0 0
      %431 = vmatmul.mubr.bf16.gmra.mrb[0].mxu0 %v393
      %v432 = vpop.f32.mrb[0].mxu0
      %v433 = vadd.f32 %v389, %v432
      %v434 = vpop.f32.mrb[0].mxu0
      %v435 = vpop.f32.mrb[0].mxu0
      %v436 = vpop.f32.mrb[0].mxu0
      %437 = vdwg.mxu0
      %v438 = vld [vmem:[#allocation2] sm:$0xff]
      %v439 = vsel %vm391, %v433, -inf
      %440 = vmax.xlane.f32.xlu0 %v439
      %v441 = vpop.xlane.xlu0 %440
      %v442 = vmax.f32 %v438, %v441
      %v443 = vsub.f32 %v438, %v442
      %v444 = vmul.f32 %v443, 1.442695
      %v445 = vpow.pop %v444
      %447 = vset.pattern.permute.xlu0 0
      %448 = vperm.xlu0 %447, %v442
      %v449 = vpop.permute.xlu0 %448
      %v451 = vsub.f32 %v433, %v449
      %v452 = vmul.f32 %v451, 1.442695
      %v453 = vpow.pop %v452
      %v454 = vld [vmem:[#allocation3] sm:$0xff]
      %v455 = vmul.f32 %v445, %v454
      %v456 = vsel %vm391, %v453, 0.0
      %457 = vadd.xlane.f32.xlu0 %v456
      %v458 = vpop.xlane.xlu0 %457
      %v459 = vadd.f32 %v455, %v458
      %vm460 = vcmask 7168
      %461 = vst.msk [vmem:[#allocation3] sm:$0xff] %vm460, %v459
      %v462 = vld [vmem:[#allocation4] sm:$0xff]
      %464 = vset.pattern.permute.xlu0 0
      %465 = vperm.xlu0 %464, %v445
      %v466 = vpop.permute.xlu0 %465
      %v468 = vmul.f32 %v466, %v462
      %v469 = vpack.c.bf16 %v453, %v453
      %v471 = vsel %vm391, %v469, 0
      %vm473 = vcmask 1043456
      %v475 = vsel %vm473, %v383, 0
      %477 = vmatprep.subr.bf16.mxu0 0
      %478 = vmatpush1.bf16.msra.mxu0 %v475
      %479 = vmatprep.subr.bf16.mxu0 0
      %480 = vmatpush1.bf16.msra.mxu0 0
      %481 = vmatprep.subr.bf16.mxu0 0
      %482 = vmatpush1.bf16.msra.mxu0 0
      %483 = vmatprep.subr.bf16.mxu0 0
      %484 = vmatpush1.bf16.msra.mxu0 0
      %485 = vmatprep.subr.bf16.mxu0 0
      %486 = vmatpush1.bf16.msra.mxu0 0
      %487 = vmatprep.subr.bf16.mxu0 0
      %488 = vmatpush1.bf16.msra.mxu0 0
      %489 = vmatprep.subr.bf16.mxu0 0
      %490 = vmatpush1.bf16.msra.mxu0 0
      %491 = vmatprep.subr.bf16.mxu0 0
      %492 = vmatpush1.bf16.msra.mxu0 0
      %493 = vmatprep.subr.bf16.mxu0 0
      %494 = vmatpush1.bf16.msra.mxu0 0
      %495 = vmatprep.subr.bf16.mxu0 0
      %496 = vmatpush1.bf16.msra.mxu0 0
      %497 = vmatprep.subr.bf16.mxu0 0
      %498 = vmatpush1.bf16.msra.mxu0 0
      %499 = vmatprep.subr.bf16.mxu0 0
      %500 = vmatpush1.bf16.msra.mxu0 0
      %501 = vmatprep.subr.bf16.mxu0 0
      %502 = vmatpush1.bf16.msra.mxu0 0
      %503 = vmatprep.subr.bf16.mxu0 0
      %504 = vmatpush1.bf16.msra.mxu0 0
      %505 = vmatprep.subr.bf16.mxu0 0
      %506 = vmatpush1.bf16.msra.mxu0 0
      %507 = vmatprep.subr.bf16.mxu0 0
      %508 = vmatpush1.bf16.msra.mxu0 0
      %509 = vmatprep.mubr.bf16.mxu0 0
      %510 = vmatmul.mubr.bf16.gmra.mrb[0].mxu0 %v471
      %v511 = vpop.f32.mrb[0].mxu0
      %v512 = vadd.f32 0.0, %v511
      %v513 = vpop.f32.mrb[0].mxu0
      %v514 = vpop.f32.mrb[0].mxu0
      %v515 = vpop.f32.mrb[0].mxu0
      %516 = vdwg.mxu0
      %v517 = vadd.f32 %v468, %v512
      %518 = vst.msk [vmem:[#allocation4] sm:$0xff] %vm391, %v517
      %519 = vst.msk [vmem:[#allocation2] sm:$0xff] %vm460, %v442
      // Predicated region
      $region41: #{_lambda_.14} parent=35 // pred_check
        %p520 = pneg %p372
      $region42: #{_lambda_.14} parent=35 // pred_check_branch
        %522 = sbr.rel (%p520) target = $region44
      $region43: #{_lambda_.14} parent=35 // pred_region
        %v523 = vld [vmem:[#allocation3] sm:$0xff]
        %v524 = vrcp.pop %v523
        %v525 = vld [vmem:[#allocation4] sm:$0xff]
        %527 = vset.pattern.permute.xlu0 0
        %528 = vperm.xlu0 %527, %v524
        %v529 = vpop.permute.xlu0 %528
        %v531 = vmul.f32 %v525, %v529
        %v532 = vpack.c.bf16 %v531, %v531
        %vm533 = vcmask 60416
        %534 = vst.msk [vmem:[%s370] sm:$0xf] %vm533, %v532
      $region44: #{_lambda_.14} parent=35 // pred_fallthru
        _
      %p535 = scmp.lt.s32.totalorder %s21, 1
      %s536 = scalar_select %p535, %s21, 1
      %p537 = scmp.lt.s32.totalorder %s22, 3
      %s538 = scalar_select %p537, %s22, 3
      %p539 = scmp.lt.s32.totalorder %s23, 0
      %s540 = scalar_select %p539, %s23, 0
      %s541 = sadd.s32 %s540, %s538
      %s542 = smul.addr %s536, 4
      %s543 = sadd.s32 %s541, %s542
      %s544 = smul.addr %s543, 4
      %s545 = scalar_lea.vmem %s4, %s544
      // Predicated region
      $region45: #{_lambda_.14} parent=35 // pred_check
        %p546 = pneg %p181
      $region46: #{_lambda_.14} parent=35 // pred_check_branch
        %548 = sbr.rel (%p546) target = $region48
      $region47: #{_lambda_.14} parent=35 // pred_region
        _
      $region48: #{_lambda_.14} parent=35 // pred_fallthru
        _
    $region36: #{_lambda_.14} parent=5 // pred_fallthru
      _
    %p549 = scmp.le.s32.totalorder 2, %s10
    // Predicated region
    $region49: #{_lambda_.14} parent=5 // pred_check
      %p550 = pneg %p549
    $region50: #{_lambda_.14} parent=5 // pred_check_branch
      %552 = sbr.rel (%p550) target = $region52
    $region51: #{_lambda_.14} parent=5 // pred_region
      %s553 = ssub.s32 %s10, 2
      // Predicated region
      $region53: #{_lambda_.14} parent=51 // pred_check
        %p554 = pneg %p187
      $region54: #{_lambda_.14} parent=51 // pred_check_branch
        %556 = sbr.rel (%p554) target = $region56
      $region55: #{_lambda_.14} parent=51 // pred_region
        %p557 = scmp.lt.s32.totalorder %s25, 1
        %s558 = scalar_select %p557, %s25, 1
        %p559 = scmp.lt.s32.totalorder %s26, 3
        %s560 = scalar_select %p559, %s26, 3
        %p561 = scmp.lt.s32.totalorder %s27, 0
        %s562 = scalar_select %p561, %s27, 0
        %s563 = sadd.s32 %s562, %s560
        %s564 = smul.addr %s558, 4
        %s565 = sadd.s32 %s563, %s564
        %s566 = smul.addr %s565, 4
        %s567 = scalar_lea.vmem %s4, %s566
      $region56: #{_lambda_.14} parent=51 // pred_fallthru
        _
    $region52: #{_lambda_.14} parent=5 // pred_fallthru
      _
  $region6: #{_lambda_.14} parent=0 // loop_footer
    %s14 = sadd.s32 1, %s10
  $region7: #{_lambda_.14} parent=0 // loop_footer_branch
    %9 = sbr.rel target = $region3
  $region8: #{_lambda_.14} parent=0 // loop_exit
    _

// kernel: _lambda_.13
$region0: #{_lambda_.13}
  #allocation0 [shape = 'u32[]', space=smem, size = 0x4, offset = 0x4, fixed_abs, tag = 'smem constant byte address 0x4 - core index']
  #allocation1 [shape = 'u32[144,128]{1,0:T(1,128)}', space=vmem, size = 0x12000, scoped, tag = 'internal scratch']
  %s0 = inlined_call_operand.vmem [shape: bf16[16,32], index: 0, kind: input, shape index: {}]
  %s1 = inlined_call_operand.vmem [shape: bf16[32,96], index: 1, kind: input, shape index: {}]
  %s2 = inlined_call_operand.vmem [shape: f32[1,96], index: 2, kind: input, shape index: {}]
  %s3 = inlined_call_operand.vmem [shape: bf16[16,96], index: 3, kind: output, shape index: {}]
  %s4 = sld [smem:[#allocation0]]
  $region22: #{_lambda_.13} parent=0
    _
  %s6 = ssub.s32 1, %s4
  %s7 = scalar_select 0, %s6, %s4
  // Predicated region
  $region2: #{_lambda_.13} parent=0 // pred_check
    _
  $region3: #{_lambda_.13} parent=0 // pred_check_branch
    %9 = sbr.rel (0) target = $region5
  $region4: #{_lambda_.13} parent=0 // pred_region
    _
  $region5: #{_lambda_.13} parent=0 // pred_fallthru
    _
  // Predicated region
  $region6: #{_lambda_.13} parent=0 // pred_check
    _
  $region7: #{_lambda_.13} parent=0 // pred_check_branch
    %11 = sbr.rel (0) target = $region9
  $region8: #{_lambda_.13} parent=0 // pred_region
    _
  $region9: #{_lambda_.13} parent=0 // pred_fallthru
    _
  // Predicated region
  $region10: #{_lambda_.13} parent=0 // pred_check
    _
  $region11: #{_lambda_.13} parent=0 // pred_check_branch
    %13 = sbr.rel (0) target = $region13
  $region12: #{_lambda_.13} parent=0 // pred_region
    _
  $region13: #{_lambda_.13} parent=0 // pred_fallthru
    _
  %v15 = vld [vmem:[%s0] sm:$0xf]
  %v16 = vld [vmem:[%s0 + $0x4] sm:$0xf]
  %v17 = vld [vmem:[%s1] sm:$0xf]
  %v18 = vld [vmem:[%s1 + $0x4] sm:$0xf]
  %v19 = vld [vmem:[%s1 + $0x8] sm:$0xf]
  %v20 = vld [vmem:[%s1 + $0xc] sm:$0xf]
  %v21 = vld [vmem:[%s2] sm:$0x1]
  %v23 = vlaneseq
  %v24 = vshrl.u32 %v23, 7
  %v25 = vsub.s32 0, %v24
  %v26 = vrot.slane %v21, %v25
  %v30 = vunpack.c.l.b16 %v15
  %v31 = vunpack.c.l.b16 %v16
  %v32 = vpack.c.b16 %v31, %v30
  %v37 = vunpack.c.l.b16 %v17
  %v38 = vunpack.c.l.b16 %v18
  %v39 = vunpack.c.l.b16 %v19
  %v40 = vunpack.c.l.b16 %v20
  %v41 = vpack.c.b16 %v38, %v37
  %v42 = vpack.c.b16 %v40, %v39
  %vm45 = vcmask 261120
  %v47 = vsel %vm45, %v32, 0
  %49 = vmatprep.subr.bf16.mxu0 0
  %50 = vmatpush1.bf16.msra.mxu0 %v41
  %51 = vmatprep.subr.bf16.mxu0 0
  %52 = vmatpush1.bf16.msra.mxu0 %v42
  %53 = vmatprep.subr.bf16.mxu0 0
  %54 = vmatpush1.bf16.msra.mxu0 0
  %55 = vmatprep.subr.bf16.mxu0 0
  %56 = vmatpush1.bf16.msra.mxu0 0
  %57 = vmatprep.subr.bf16.mxu0 0
  %58 = vmatpush1.bf16.msra.mxu0 0
  %59 = vmatprep.subr.bf16.mxu0 0
  %60 = vmatpush1.bf16.msra.mxu0 0
  %61 = vmatprep.subr.bf16.mxu0 0
  %62 = vmatpush1.bf16.msra.mxu0 0
  %63 = vmatprep.subr.bf16.mxu0 0
  %64 = vmatpush1.bf16.msra.mxu0 0
  %65 = vmatprep.subr.bf16.mxu0 0
  %66 = vmatpush1.bf16.msra.mxu0 0
  %67 = vmatprep.subr.bf16.mxu0 0
  %68 = vmatpush1.bf16.msra.mxu0 0
  %69 = vmatprep.subr.bf16.mxu0 0
  %70 = vmatpush1.bf16.msra.mxu0 0
  %71 = vmatprep.subr.bf16.mxu0 0
  %72 = vmatpush1.bf16.msra.mxu0 0
  %73 = vmatprep.subr.bf16.mxu0 0
  %74 = vmatpush1.bf16.msra.mxu0 0
  %75 = vmatprep.subr.bf16.mxu0 0
  %76 = vmatpush1.bf16.msra.mxu0 0
  %77 = vmatprep.subr.bf16.mxu0 0
  %78 = vmatpush1.bf16.msra.mxu0 0
  %79 = vmatprep.subr.bf16.mxu0 0
  %80 = vmatpush1.bf16.msra.mxu0 0
  %81 = vmatprep.mubr.bf16.mxu0 0
  %82 = vmatmul.mubr.bf16.gmra.mrb[0].mxu0 %v47
  %v83 = vpop.f32.mrb[0].mxu0
  %v84 = vadd.f32 %v26, %v83
  %v85 = vpop.f32.mrb[0].mxu0
  %v86 = vpop.f32.mrb[0].mxu0
  %v87 = vadd.f32 %v26, %v86
  %v88 = vpop.f32.mrb[0].mxu0
  %89 = vdwg.mxu0
  %v90 = vpack.c.bf16 %v87, %v84
  %v92 = vunpack.c.l.b16 %v90
  %v93 = vunpack.c.h.b16 %v90
  %v94 = vpack.c.b16 %v92, %v92
  %v95 = vpack.c.b16 %v93, %v93
  %vm98 = vcmask 781312
  %99 = vst.msk [vmem:[%s3] sm:$0xf] %vm98, %v94
  %100 = vst.msk [vmem:[%s3 + $0x4] sm:$0xf] %vm98, %v95
  // Predicated region
  $region14: #{_lambda_.13} parent=0 // pred_check
    _
  $region15: #{_lambda_.13} parent=0 // pred_check_branch
    %102 = sbr.rel (0) target = $region17
  $region16: #{_lambda_.13} parent=0 // pred_region
    _
  $region17: #{_lambda_.13} parent=0 // pred_fallthru
    _
  // Predicated region
  $region18: #{_lambda_.13} parent=0 // pred_check
    _
  $region19: #{_lambda_.13} parent=0 // pred_check_branch
    %104 = sbr.rel (0) target = $region21
  $region20: #{_lambda_.13} parent=0 // pred_region
    _
  $region21: #{_lambda_.13} parent=0 // pred_fallthru
    _

// kernel: _lambda_.16
$region0: #{_lambda_.16}
  #allocation0 [shape = 'u32[]', space=smem, size = 0x4, offset = 0x4, fixed_abs, tag = 'smem constant byte address 0x4 - core index']
  #allocation1 [shape = 'u32[144,128]{1,0:T(1,128)}', space=vmem, size = 0x12000, scoped, tag = 'internal scratch']
  %s0 = inlined_call_operand.vmem [shape: bf16[16,32], index: 0, kind: input, shape index: {}]
  %s1 = inlined_call_operand.vmem [shape: bf16[32,64], index: 1, kind: input, shape index: {}]
  %s2 = inlined_call_operand.vmem [shape: f32[1,64], index: 2, kind: input, shape index: {}]
  %s3 = inlined_call_operand.vmem [shape: bf16[16,64], index: 3, kind: output, shape index: {}]
  %s4 = sld [smem:[#allocation0]]
  $region22: #{_lambda_.16} parent=0
    _
  %s6 = ssub.s32 1, %s4
  %s7 = scalar_select 0, %s6, %s4
  // Predicated region
  $region2: #{_lambda_.16} parent=0 // pred_check
    _
  $region3: #{_lambda_.16} parent=0 // pred_check_branch
    %9 = sbr.rel (0) target = $region5
  $region4: #{_lambda_.16} parent=0 // pred_region
    _
  $region5: #{_lambda_.16} parent=0 // pred_fallthru
    _
  // Predicated region
  $region6: #{_lambda_.16} parent=0 // pred_check
    _
  $region7: #{_lambda_.16} parent=0 // pred_check_branch
    %11 = sbr.rel (0) target = $region9
  $region8: #{_lambda_.16} parent=0 // pred_region
    _
  $region9: #{_lambda_.16} parent=0 // pred_fallthru
    _
  // Predicated region
  $region10: #{_lambda_.16} parent=0 // pred_check
    _
  $region11: #{_lambda_.16} parent=0 // pred_check_branch
    %13 = sbr.rel (0) target = $region13
  $region12: #{_lambda_.16} parent=0 // pred_region
    _
  $region13: #{_lambda_.16} parent=0 // pred_fallthru
    _
  %v15 = vld [vmem:[%s0] sm:$0xf]
  %v16 = vld [vmem:[%s0 + $0x4] sm:$0xf]
  %v17 = vld [vmem:[%s1] sm:$0xf]
  %v18 = vld [vmem:[%s1 + $0x4] sm:$0xf]
  %v19 = vld [vmem:[%s1 + $0x8] sm:$0xf]
  %v20 = vld [vmem:[%s1 + $0xc] sm:$0xf]
  %v21 = vld [vmem:[%s2] sm:$0x1]
  %v23 = vlaneseq
  %v24 = vshrl.u32 %v23, 7
  %v25 = vsub.s32 0, %v24
  %v26 = vrot.slane %v21, %v25
  %v30 = vunpack.c.l.b16 %v15
  %v31 = vunpack.c.l.b16 %v16
  %v32 = vpack.c.b16 %v31, %v30
  %v37 = vunpack.c.l.b16 %v17
  %v38 = vunpack.c.l.b16 %v18
  %v39 = vunpack.c.l.b16 %v19
  %v40 = vunpack.c.l.b16 %v20
  %v41 = vpack.c.b16 %v38, %v37
  %v42 = vpack.c.b16 %v40, %v39
  %vm45 = vcmask 261120
  %v47 = vsel %vm45, %v32, 0
  %49 = vmatprep.subr.bf16.mxu0 0
  %50 = vmatpush1.bf16.msra.mxu0 %v41
  %51 = vmatprep.subr.bf16.mxu0 0
  %52 = vmatpush1.bf16.msra.mxu0 %v42
  %53 = vmatprep.subr.bf16.mxu0 0
  %54 = vmatpush1.bf16.msra.mxu0 0
  %55 = vmatprep.subr.bf16.mxu0 0
  %56 = vmatpush1.bf16.msra.mxu0 0
  %57 = vmatprep.subr.bf16.mxu0 0
  %58 = vmatpush1.bf16.msra.mxu0 0
  %59 = vmatprep.subr.bf16.mxu0 0
  %60 = vmatpush1.bf16.msra.mxu0 0
  %61 = vmatprep.subr.bf16.mxu0 0
  %62 = vmatpush1.bf16.msra.mxu0 0
  %63 = vmatprep.subr.bf16.mxu0 0
  %64 = vmatpush1.bf16.msra.mxu0 0
  %65 = vmatprep.subr.bf16.mxu0 0
  %66 = vmatpush1.bf16.msra.mxu0 0
  %67 = vmatprep.subr.bf16.mxu0 0
  %68 = vmatpush1.bf16.msra.mxu0 0
  %69 = vmatprep.subr.bf16.mxu0 0
  %70 = vmatpush1.bf16.msra.mxu0 0
  %71 = vmatprep.subr.bf16.mxu0 0
  %72 = vmatpush1.bf16.msra.mxu0 0
  %73 = vmatprep.subr.bf16.mxu0 0
  %74 = vmatpush1.bf16.msra.mxu0 0
  %75 = vmatprep.subr.bf16.mxu0 0
  %76 = vmatpush1.bf16.msra.mxu0 0
  %77 = vmatprep.subr.bf16.mxu0 0
  %78 = vmatpush1.bf16.msra.mxu0 0
  %79 = vmatprep.subr.bf16.mxu0 0
  %80 = vmatpush1.bf16.msra.mxu0 0
  %81 = vmatprep.mubr.bf16.mxu0 0
  %82 = vmatmul.mubr.bf16.gmra.mrb[0].mxu0 %v47
  %v83 = vpop.f32.mrb[0].mxu0
  %v84 = vadd.f32 %v26, %v83
  %v85 = vpop.f32.mrb[0].mxu0
  %v86 = vpop.f32.mrb[0].mxu0
  %v87 = vadd.f32 %v26, %v86
  %v88 = vpop.f32.mrb[0].mxu0
  %89 = vdwg.mxu0
  %v90 = vmul.f32 %v84, %v84
  %v91 = vmul.f32 %v87, %v87
  %v92 = vmul.f32 %v84, %v90
  %v93 = vmul.f32 %v87, %v91
  %v94 = vmul.f32 %v92, 0.044715
  %v95 = vmul.f32 %v93, 0.044715
  %v96 = vadd.f32 %v84, %v94
  %v97 = vadd.f32 %v87, %v95
  %v98 = vmul.f32 %v96, 0.7978846
  %v99 = vmul.f32 %v97, 0.7978846
  %v100 = vtanh.pop %v98
  %v101 = vtanh.pop %v99
  %v102 = vadd.f32 %v100, 1.0
  %v103 = vadd.f32 %v101, 1.0
  %v104 = vmul.f32 %v102, 0.5
  %v105 = vmul.f32 %v103, 0.5
  %v106 = vmul.f32 %v84, %v104
  %v107 = vmul.f32 %v87, %v105
  %v108 = vpack.c.bf16 %v107, %v106
  %v110 = vunpack.c.l.b16 %v108
  %v111 = vunpack.c.h.b16 %v108
  %v112 = vpack.c.b16 %v110, %v110
  %v113 = vpack.c.b16 %v111, %v111
  %vm116 = vcmask 519168
  %117 = vst.msk [vmem:[%s3] sm:$0xf] %vm116, %v112
  %118 = vst.msk [vmem:[%s3 + $0x4] sm:$0xf] %vm116, %v113
  // Predicated region
  $region14: #{_lambda_.16} parent=0 // pred_check
    _
  $region15: #{_lambda_.16} parent=0 // pred_check_branch
    %120 = sbr.rel (0) target = $region17
  $region16: #{_lambda_.16} parent=0 // pred_region
    _
  $region17: #{_lambda_.16} parent=0 // pred_fallthru
    _
  // Predicated region
  $region18: #{_lambda_.16} parent=0 // pred_check
    _
  $region19: #{_lambda_.16} parent=0 // pred_check_branch
    %122 = sbr.rel (0) target = $region21
  $region20: #{_lambda_.16} parent=0 // pred_region
    _
  $region21: #{_lambda_.16} parent=0 // pred_fallthru
    _

// kernel: _lambda_.17
$region0: #{_lambda_.17}
  #allocation0 [shape = 'u32[]', space=smem, size = 0x4, offset = 0x4, fixed_abs, tag = 'smem constant byte address 0x4 - core index']
  #allocation1 [shape = 'u32[144,128]{1,0:T(1,128)}', space=vmem, size = 0x12000, scoped, tag = 'internal scratch']
  %s0 = inlined_call_operand.vmem [shape: bf16[16,64], index: 0, kind: input, shape index: {}]
  %s1 = inlined_call_operand.vmem [shape: bf16[64,32], index: 1, kind: input, shape index: {}]
  %s2 = inlined_call_operand.vmem [shape: f32[1,32], index: 2, kind: input, shape index: {}]
  %s3 = inlined_call_operand.vmem [shape: bf16[16,32], index: 3, kind: input, shape index: {}]
  %s4 = inlined_call_operand.vmem [shape: f32[1,32], index: 4, kind: input, shape index: {}]
  %s5 = inlined_call_operand.vmem [shape: f32[1,32], index: 5, kind: input, shape index: {}]
  %s6 = inlined_call_operand.vmem [shape: bf16[16,32], index: 6, kind: output, shape index: {}]
  %s7 = sld [smem:[#allocation0]]
  $region34: #{_lambda_.17} parent=0
    _
  %s9 = ssub.s32 1, %s7
  %s10 = scalar_select 0, %s9, %s7
  // Predicated region
  $region2: #{_lambda_.17} parent=0 // pred_check
    _
  $region3: #{_lambda_.17} parent=0 // pred_check_branch
    %12 = sbr.rel (0) target = $region5
  $region4: #{_lambda_.17} parent=0 // pred_region
    _
  $region5: #{_lambda_.17} parent=0 // pred_fallthru
    _
  // Predicated region
  $region6: #{_lambda_.17} parent=0 // pred_check
    _
  $region7: #{_lambda_.17} parent=0 // pred_check_branch
    %14 = sbr.rel (0) target = $region9
  $region8: #{_lambda_.17} parent=0 // pred_region
    _
  $region9: #{_lambda_.17} parent=0 // pred_fallthru
    _
  // Predicated region
  $region10: #{_lambda_.17} parent=0 // pred_check
    _
  $region11: #{_lambda_.17} parent=0 // pred_check_branch
    %16 = sbr.rel (0) target = $region13
  $region12: #{_lambda_.17} parent=0 // pred_region
    _
  $region13: #{_lambda_.17} parent=0 // pred_fallthru
    _
  // Predicated region
  $region14: #{_lambda_.17} parent=0 // pred_check
    _
  $region15: #{_lambda_.17} parent=0 // pred_check_branch
    %18 = sbr.rel (0) target = $region17
  $region16: #{_lambda_.17} parent=0 // pred_region
    _
  $region17: #{_lambda_.17} parent=0 // pred_fallthru
    _
  // Predicated region
  $region18: #{_lambda_.17} parent=0 // pred_check
    _
  $region19: #{_lambda_.17} parent=0 // pred_check_branch
    %20 = sbr.rel (0) target = $region21
  $region20: #{_lambda_.17} parent=0 // pred_region
    _
  $region21: #{_lambda_.17} parent=0 // pred_fallthru
    _
  // Predicated region
  $region22: #{_lambda_.17} parent=0 // pred_check
    _
  $region23: #{_lambda_.17} parent=0 // pred_check_branch
    %22 = sbr.rel (0) target = $region25
  $region24: #{_lambda_.17} parent=0 // pred_region
    _
  $region25: #{_lambda_.17} parent=0 // pred_fallthru
    _
  %v24 = vld [vmem:[%s0] sm:$0xf]
  %v25 = vld [vmem:[%s0 + $0x4] sm:$0xf]
  %v26 = vld [vmem:[%s1] sm:$0xf]
  %v27 = vld [vmem:[%s1 + $0x4] sm:$0xf]
  %v28 = vld [vmem:[%s1 + $0x8] sm:$0xf]
  %v29 = vld [vmem:[%s1 + $0xc] sm:$0xf]
  %v30 = vld [vmem:[%s1 + $0x10] sm:$0xf]
  %v31 = vld [vmem:[%s1 + $0x14] sm:$0xf]
  %v32 = vld [vmem:[%s1 + $0x18] sm:$0xf]
  %v33 = vld [vmem:[%s1 + $0x1c] sm:$0xf]
  %v34 = vld [vmem:[%s2] sm:$0x1]
  %v36 = vlaneseq
  %v37 = vshrl.u32 %v36, 7
  %v38 = vsub.s32 0, %v37
  %v39 = vrot.slane %v34, %v38
  %v43 = vunpack.c.l.b16 %v24
  %v44 = vunpack.c.l.b16 %v25
  %v45 = vpack.c.b16 %v44, %v43
  %v54 = vunpack.c.l.b16 %v26
  %v55 = vunpack.c.l.b16 %v27
  %v56 = vunpack.c.l.b16 %v28
  %v57 = vunpack.c.l.b16 %v29
  %v58 = vunpack.c.l.b16 %v30
  %v59 = vunpack.c.l.b16 %v31
  %v60 = vunpack.c.l.b16 %v32
  %v61 = vunpack.c.l.b16 %v33
  %v62 = vpack.c.b16 %v55, %v54
  %v63 = vpack.c.b16 %v57, %v56
  %v64 = vpack.c.b16 %v59, %v58
  %v65 = vpack.c.b16 %v61, %v60
  %vm70 = vcmask 523264
  %v72 = vsel %vm70, %v45, 0
  %74 = vmatprep.subr.bf16.mxu0 0
  %75 = vmatpush1.bf16.msra.mxu0 %v62
  %76 = vmatprep.subr.bf16.mxu0 0
  %77 = vmatpush1.bf16.msra.mxu0 %v63
  %78 = vmatprep.subr.bf16.mxu0 0
  %79 = vmatpush1.bf16.msra.mxu0 %v64
  %80 = vmatprep.subr.bf16.mxu0 0
  %81 = vmatpush1.bf16.msra.mxu0 %v65
  %82 = vmatprep.subr.bf16.mxu0 0
  %83 = vmatpush1.bf16.msra.mxu0 0
  %84 = vmatprep.subr.bf16.mxu0 0
  %85 = vmatpush1.bf16.msra.mxu0 0
  %86 = vmatprep.subr.bf16.mxu0 0
  %87 = vmatpush1.bf16.msra.mxu0 0
  %88 = vmatprep.subr.bf16.mxu0 0
  %89 = vmatpush1.bf16.msra.mxu0 0
  %90 = vmatprep.subr.bf16.mxu0 0
  %91 = vmatpush1.bf16.msra.mxu0 0
  %92 = vmatprep.subr.bf16.mxu0 0
  %93 = vmatpush1.bf16.msra.mxu0 0
  %94 = vmatprep.subr.bf16.mxu0 0
  %95 = vmatpush1.bf16.msra.mxu0 0
  %96 = vmatprep.subr.bf16.mxu0 0
  %97 = vmatpush1.bf16.msra.mxu0 0
  %98 = vmatprep.subr.bf16.mxu0 0
  %99 = vmatpush1.bf16.msra.mxu0 0
  %100 = vmatprep.subr.bf16.mxu0 0
  %101 = vmatpush1.bf16.msra.mxu0 0
  %102 = vmatprep.subr.bf16.mxu0 0
  %103 = vmatpush1.bf16.msra.mxu0 0
  %104 = vmatprep.subr.bf16.mxu0 0
  %105 = vmatpush1.bf16.msra.mxu0 0
  %106 = vmatprep.mubr.bf16.mxu0 0
  %107 = vmatmul.mubr.bf16.gmra.mrb[0].mxu0 %v72
  %v108 = vpop.f32.mrb[0].mxu0
  %v109 = vadd.f32 %v39, %v108
  %v110 = vpop.f32.mrb[0].mxu0
  %v111 = vpop.f32.mrb[0].mxu0
  %v112 = vadd.f32 %v39, %v111
  %v113 = vpop.f32.mrb[0].mxu0
  %114 = vdwg.mxu0
  %v115 = vld [vmem:[%s3] sm:$0xf]
  %v116 = vld [vmem:[%s3 + $0x4] sm:$0xf]
  %v117 = vunpack.c.l.bf16 %v115
  %v118 = vunpack.c.l.bf16 %v116
  %v119 = vadd.f32 %v109, %v117
  %v120 = vadd.f32 %v112, %v118
  %vm121 = vcmask 261120
  %v122 = vsel %vm121, %v119, 0.0
  %123 = vadd.xlane.f32.xlu0 %v122
  %v124 = vpop.xlane.xlu0 %123
  %v125 = vsel %vm121, %v120, 0.0
  %126 = vadd.xlane.f32.xlu0 %v125
  %v127 = vpop.xlane.xlu0 %126
  %v128 = vrcp.pop 32.0
  %v129 = vmul.f32 %v124, %v128
  %v130 = vmul.f32 %v127, %v128
  %v131 = vsub.f32 %v119, %v129
  %v132 = vsub.f32 %v120, %v130
  %v133 = vmul.f32 %v131, %v131
  %v134 = vmul.f32 %v132, %v132
  %v135 = vsel %vm121, %v133, 0.0
  %136 = vadd.xlane.f32.xlu0 %v135
  %v137 = vpop.xlane.xlu0 %136
  %v138 = vsel %vm121, %v134, 0.0
  %139 = vadd.xlane.f32.xlu0 %v138
  %v140 = vpop.xlane.xlu0 %139
  %v141 = vmul.f32 %v137, %v128
  %v142 = vmul.f32 %v140, %v128
  %v143 = vadd.f32 %v141, 1e-12
  %v144 = vadd.f32 %v142, 1e-12
  %v145 = vrsqrt.pop %v143
  %v146 = vrsqrt.pop %v144
  %v147 = vmul.f32 %v131, %v145
  %v148 = vmul.f32 %v132, %v146
  %v149 = vld [vmem:[%s4] sm:$0x1]
  %v151 = vlaneseq
  %v152 = vshrl.u32 %v151, 7
  %v153 = vsub.s32 0, %v152
  %v154 = vrot.slane %v149, %v153
  %v156 = vmul.f32 %v147, %v154
  %v157 = vmul.f32 %v148, %v154
  %v158 = vld [vmem:[%s5] sm:$0x1]
  %v160 = vlaneseq
  %v161 = vshrl.u32 %v160, 7
  %v162 = vsub.s32 0, %v161
  %v163 = vrot.slane %v158, %v162
  %v165 = vadd.f32 %v156, %v163
  %v166 = vadd.f32 %v157, %v163
  %v167 = vpack.c.bf16 %v166, %v165
  %v169 = vunpack.c.l.b16 %v167
  %v170 = vunpack.c.h.b16 %v167
  %v171 = vpack.c.b16 %v169, %v169
  %v172 = vpack.c.b16 %v170, %v170
  %vm175 = vcmask 257024
  %176 = vst.msk [vmem:[%s6] sm:$0xf] %vm175, %v171
  %177 = vst.msk [vmem:[%s6 + $0x4] sm:$0xf] %vm175, %v172
  // Predicated region
  $region26: #{_lambda_.17} parent=0 // pred_check
    _
  $region27: #{_lambda_.17} parent=0 // pred_check_branch
    %179 = sbr.rel (0) target = $region29
  $region28: #{_lambda_.17} parent=0 // pred_region
    _
  $region29: #{_lambda_.17} parent=0 // pred_fallthru
    _
  // Predicated region
  $region30: #{_lambda_.17} parent=0 // pred_check
    _
  $region31: #{_lambda_.17} parent=0 // pred_check_branch
    %181 = sbr.rel (0) target = $region33
  $region32: #{_lambda_.17} parent=0 // pred_region
    _
  $region33: #{_lambda_.17} parent=0 // pred_fallthru
    _

// kernel: _lambda_.23
$region0: #{_lambda_.23}
  #allocation0 [shape = 'u32[]', space=smem, size = 0x4, offset = 0x4, fixed_abs, tag = 'smem constant byte address 0x4 - core index']
  #allocation1 [shape = 'u32[144,128]{1,0:T(1,128)}', space=vmem, size = 0x12000, scoped, tag = 'internal scratch']
  %s0 = inlined_call_operand.vmem [shape: bf16[2,1,32], index: 0, kind: input, shape index: {}]
  %s1 = inlined_call_operand.vmem [shape: bf16[32,32], index: 1, kind: input, shape index: {}]
  %s2 = inlined_call_operand.vmem [shape: f32[1,32], index: 2, kind: input, shape index: {}]
  %s3 = inlined_call_operand.vmem [shape: bf16[32,128], index: 3, kind: input, shape index: {}]
  %s4 = inlined_call_operand.vmem [shape: f32[1,128], index: 4, kind: input, shape index: {}]
  %s5 = inlined_call_operand.hbm [shape: f32[2,1,128], index: 5, kind: output, shape index: {}]
  %s6 = sld [smem:[#allocation0]]
  $region53: #{_lambda_.23} parent=0
    _
  %s8 = ssub.s32 1, %s6
  %s9 = scalar_select 0, %s8, %s6
  $region1: #{_lambda_.23} parent=0
    #allocation2 [shape = 'u8[1024]{0}', space=vmem, size = 0x400, scoped, tag = 'output window, operand 0']
    #allocation3 [shape = 's32[2]{0}', space=sflag, size = 0x8, scoped, tag = 'scoped memory for _lambda_.23']
    %10 = vsyncpa [#allocation3], 0
    %s11 = scalar_lea.sflag [#allocation3], 1
    %12 = vsyncpa %s11, 0
    loop: start=0, step=1, limit=4
    $region2: #{_lambda_.23} parent=1 // loop_pre_header
      _
    $region3: #{_lambda_.23} parent=1 // loop_header
      %s14 = sphi 0, %s18
      %p15 = scmp.ge.s32.totalorder %s14, 4
      %s24 = sphi 0, %s26
      %s27 = sphi 0, %s24
      %s28 = sphi 0, %s27
      %s44 = sphi 0, %s28
      %s48 = sphi 0, %s48
      %s50 = sphi 0, %s48
      %s51 = sphi 0, %s50
      %s65 = sphi 0, %s51
      %s69 = sphi 0, %s69
      %s71 = sphi 0, %s69
      %s72 = sphi 0, %s71
      %s86 = sphi 0, %s72
      %s90 = sphi 0, %s90
      %s92 = sphi 0, %s90
      %s93 = sphi 0, %s92
      %s107 = sphi 0, %s93
      %s111 = sphi 0, %s111
      %s113 = sphi 0, %s111
      %s114 = sphi 0, %s113
      %s128 = sphi 0, %s114
      %s134 = sphi 0, %s136
      %s137 = sphi 0, %s134
      %s138 = sphi 0, %s137
      %s154 = sphi 0, %s138
    $region4: #{_lambda_.23} parent=1 // loop_header_branch
      %17 = sbr.rel (%p15) target = $region8
    $region5: #{_lambda_.23} parent=1 // loop_body
      %s19 = ssub.s32 %s14, 1
      %s20 = ssub.s32 %s14, 2
      %s21 = sadd.s32 %s14, 1
      %s22 = ssub.s32 %s14, %s21
      %p23 = scmp.eq.s32.totalorder %s22, 0
      %s25 = sadd.s32 %s24, 1
      %s26 = scalar_select %p23, %s24, %s25
      %p29 = pneg %p23
      %p30 = scmp.eq.s32.totalorder %s14, 1
      %p31 = por %p29, %p30
      %p32 = scmp.ne.s32.totalorder %s24, %s27
      %p33 = scmp.eq.s32.totalorder %s14, 0
      %p34 = por %p32, %p33
      %p35 = scmp.ne.s32.totalorder %s24, %s27
      %p36 = scmp.eq.s32.totalorder %s19, 1
      %p37 = por %p35, %p36
      %p38 = scmp.ne.s32.totalorder %s27, %s28
      %p39 = scmp.eq.s32.totalorder %s19, 0
      %p40 = por %p38, %p39
      %p41 = scmp.ne.s32.totalorder %s27, %s28
      %p42 = scmp.eq.s32.totalorder %s20, 1
      %p43 = por %p41, %p42
      %p45 = scmp.ne.s32.totalorder %s28, %s44
      %p46 = scmp.eq.s32.totalorder %s20, 0
      %p47 = por %p45, %p46
      %s49 = sadd.s32 %s48, 1
      %p52 = scmp.eq.s32.totalorder %s14, 1
      %p53 = scmp.ne.s32.totalorder %s48, %s50
      %p54 = scmp.eq.s32.totalorder %s14, 0
      %p55 = por %p53, %p54
      %p56 = scmp.ne.s32.totalorder %s48, %s50
      %p57 = scmp.eq.s32.totalorder %s19, 1
      %p58 = por %p56, %p57
      %p59 = scmp.ne.s32.totalorder %s50, %s51
      %p60 = scmp.eq.s32.totalorder %s19, 0
      %p61 = por %p59, %p60
      %p62 = scmp.ne.s32.totalorder %s50, %s51
      %p63 = scmp.eq.s32.totalorder %s20, 1
      %p64 = por %p62, %p63
      %p66 = scmp.ne.s32.totalorder %s51, %s65
      %p67 = scmp.eq.s32.totalorder %s20, 0
      %p68 = por %p66, %p67
      %s70 = sadd.s32 %s69, 1
      %p73 = scmp.eq.s32.totalorder %s14, 1
      %p74 = scmp.ne.s32.totalorder %s69, %s71
      %p75 = scmp.eq.s32.totalorder %s14, 0
      %p76 = por %p74, %p75
      %p77 = scmp.ne.s32.totalorder %s69, %s71
      %p78 = scmp.eq.s32.totalorder %s19, 1
      %p79 = por %p77, %p78
      %p80 = scmp.ne.s32.totalorder %s71, %s72
      %p81 = scmp.eq.s32.totalorder %s19, 0
      %p82 = por %p80, %p81
      %p83 = scmp.ne.s32.totalorder %s71, %s72
      %p84 = scmp.eq.s32.totalorder %s20, 1
      %p85 = por %p83, %p84
      %p87 = scmp.ne.s32.totalorder %s72, %s86
      %p88 = scmp.eq.s32.totalorder %s20, 0
      %p89 = por %p87, %p88
      %s91 = sadd.s32 %s90, 1
      %p94 = scmp.eq.s32.totalorder %s14, 1
      %p95 = scmp.ne.s32.totalorder %s90, %s92
      %p96 = scmp.eq.s32.totalorder %s14, 0
      %p97 = por %p95, %p96
      %p98 = scmp.ne.s32.totalorder %s90, %s92
      %p99 = scmp.eq.s32.totalorder %s19, 1
      %p100 = por %p98, %p99
      %p101 = scmp.ne.s32.totalorder %s92, %s93
      %p102 = scmp.eq.s32.totalorder %s19, 0
      %p103 = por %p101, %p102
      %p104 = scmp.ne.s32.totalorder %s92, %s93
      %p105 = scmp.eq.s32.totalorder %s20, 1
      %p106 = por %p104, %p105
      %p108 = scmp.ne.s32.totalorder %s93, %s107
      %p109 = scmp.eq.s32.totalorder %s20, 0
      %p110 = por %p108, %p109
      %s112 = sadd.s32 %s111, 1
      %p115 = scmp.eq.s32.totalorder %s14, 1
      %p116 = scmp.ne.s32.totalorder %s111, %s113
      %p117 = scmp.eq.s32.totalorder %s14, 0
      %p118 = por %p116, %p117
      %p119 = scmp.ne.s32.totalorder %s111, %s113
      %p120 = scmp.eq.s32.totalorder %s19, 1
      %p121 = por %p119, %p120
      %p122 = scmp.ne.s32.totalorder %s113, %s114
      %p123 = scmp.eq.s32.totalorder %s19, 0
      %p124 = por %p122, %p123
      %p125 = scmp.ne.s32.totalorder %s113, %s114
      %p126 = scmp.eq.s32.totalorder %s20, 1
      %p127 = por %p125, %p126
      %p129 = scmp.ne.s32.totalorder %s114, %s128
      %p130 = scmp.eq.s32.totalorder %s20, 0
      %p131 = por %p129, %p130
      %s132 = ssub.s32 %s14, %s21
      %p133 = scmp.eq.s32.totalorder %s132, 0
      %s135 = sadd.s32 %s134, 1
      %s136 = scalar_select %p133, %s134, %s135
      %p139 = pneg %p133
      %p140 = scmp.eq.s32.totalorder %s14, 1
      %p141 = por %p139, %p140
      %p142 = scmp.ne.s32.totalorder %s134, %s137
      %p143 = scmp.eq.s32.totalorder %s14, 0
      %p144 = por %p142, %p143
      %p145 = scmp.ne.s32.totalorder %s134, %s137
      %p146 = scmp.eq.s32.totalorder %s19, 1
      %p147 = por %p145, %p146
      %p148 = scmp.ne.s32.totalorder %s137, %s138
      %p149 = scmp.eq.s32.totalorder %s19, 0
      %p150 = por %p148, %p149
      %p151 = scmp.ne.s32.totalorder %s137, %s138
      %p152 = scmp.eq.s32.totalorder %s20, 1
      %p153 = por %p151, %p152
      %p155 = scmp.ne.s32.totalorder %s138, %s154
      %p156 = scmp.eq.s32.totalorder %s20, 0
      %p157 = por %p155, %p156
      %p158 = scmp.le.s32.totalorder 1, %s14
      %p159 = scmp.lt.s32.totalorder %s14, 3
      %p160 = pnand %p158, %p159
      %p161 = pneg %p160
      // Predicated region
      $region9: #{_lambda_.23} parent=5 // pred_check
        _
      $region10: #{_lambda_.23} parent=5 // pred_check_branch
        %163 = sbr.rel (%p160) target = $region12
      $region11: #{_lambda_.23} parent=5 // pred_region
        %s164 = ssub.s32 %s14, 1
        // Predicated region
        $region13: #{_lambda_.23} parent=11 // pred_check
          %p165 = pneg %p61
        $region14: #{_lambda_.23} parent=11 // pred_check_branch
          %167 = sbr.rel (%p165) target = $region16
        $region15: #{_lambda_.23} parent=11 // pred_region
          _
        $region16: #{_lambda_.23} parent=11 // pred_fallthru
          _
        // Predicated region
        $region17: #{_lambda_.23} parent=11 // pred_check
          %p168 = pneg %p82
        $region18: #{_lambda_.23} parent=11 // pred_check_branch
          %170 = sbr.rel (%p168) target = $region20
        $region19: #{_lambda_.23} parent=11 // pred_region
          _
        $region20: #{_lambda_.23} parent=11 // pred_fallthru
          _
        // Predicated region
        $region21: #{_lambda_.23} parent=11 // pred_check
          %p171 = pneg %p103
        $region22: #{_lambda_.23} parent=11 // pred_check_branch
          %173 = sbr.rel (%p171) target = $region24
        $region23: #{_lambda_.23} parent=11 // pred_region
          _
        $region24: #{_lambda_.23} parent=11 // pred_fallthru
          _
        // Predicated region
        $region25: #{_lambda_.23} parent=11 // pred_check
          %p174 = pneg %p124
        $region26: #{_lambda_.23} parent=11 // pred_check_branch
          %176 = sbr.rel (%p174) target = $region28
        $region27: #{_lambda_.23} parent=11 // pred_region
          _
        $region28: #{_lambda_.23} parent=11 // pred_fallthru
          _
      $region12: #{_lambda_.23} parent=5 // pred_fallthru
        _
      %p177 = scmp.lt.s32.totalorder %s14, 2
      // Predicated region
      $region29: #{_lambda_.23} parent=5 // pred_check
        %p178 = pneg %p177
      $region30: #{_lambda_.23} parent=5 // pred_check_branch
        %180 = sbr.rel (%p178) target = $region32
      $region31: #{_lambda_.23} parent=5 // pred_region
        // Predicated region
        $region33: #{_lambda_.23} parent=31 // pred_check
          %p181 = pneg %p34
        $region34: #{_lambda_.23} parent=31 // pred_check_branch
          %183 = sbr.rel (%p181) target = $region36
        $region35: #{_lambda_.23} parent=31 // pred_region
          %p184 = scmp.lt.s32.totalorder %s14, 1
          %s185 = scalar_select %p184, %s14, 1
          %s186 = scalar_lea.vmem %s0, %s185
        $region36: #{_lambda_.23} parent=31 // pred_fallthru
          _
      $region32: #{_lambda_.23} parent=5 // pred_fallthru
        _
      %p187 = scmp.le.s32.totalorder 1, %s14
      %p188 = scmp.lt.s32.totalorder %s14, 3
      %p189 = pnand %p187, %p188
      %p190 = pneg %p189
      // Predicated region
      $region37: #{_lambda_.23} parent=5 // pred_check
        _
      $region38: #{_lambda_.23} parent=5 // pred_check_branch
        %192 = sbr.rel (%p189) target = $region40
      $region39: #{_lambda_.23} parent=5 // pred_region
        %s193 = ssub.s32 %s14, 1
        %p194 = scmp.lt.s32.totalorder %s19, 1
        %s195 = scalar_select %p194, %s19, 1
        %s196 = scalar_lea.vmem %s0, %s195
        %p197 = pneg %p40
        %p198 = pneg %p37
        %p199 = pneg %p61
        %p200 = pneg %p58
        %p201 = pneg %p82
        %p202 = pneg %p79
        %p203 = pneg %p103
        %p204 = pneg %p100
        %p205 = pneg %p124
        %p206 = pneg %p121
        %p207 = pneg %p150
        %p208 = pneg %p147
        %s209 = sand.u32 %s137, 1
        %s210 = scalar_lea.sflag [#allocation3], %s209
        %s211 = sand.u32 %s137, 1
        %s212 = scalar_lea.vmem [#allocation2], %s211
        %p213 = scmp.lt.s32.totalorder %s19, 1
        %s214 = scalar_select %p213, %s19, 1
        %s215 = scalar_lea.vmem %s0, %s214
        %v217 = vld [vmem:[%s215] sm:$0x1]
        %v218 = vld [vmem:[%s1] sm:$0xf]
        %v219 = vld [vmem:[%s1 + $0x4] sm:$0xf]
        %v220 = vld [vmem:[%s1 + $0x8] sm:$0xf]
        %v221 = vld [vmem:[%s1 + $0xc] sm:$0xf]
        %v222 = vld [vmem:[%s2] sm:$0x1]
        %v227 = vunpack.c.l.b16 %v218
        %v228 = vunpack.c.l.b16 %v219
        %v229 = vunpack.c.l.b16 %v220
        %v230 = vunpack.c.l.b16 %v221
        %v231 = vpack.c.b16 %v228, %v227
        %v232 = vpack.c.b16 %v230, %v229
        %vm235 = vcmask 261120
        %v237 = vsel %vm235, %v217, 0
        %239 = vmatprep.subr.bf16.mxu0 0
        %240 = vmatpush1.bf16.msra.mxu0 %v231
        %241 = vmatprep.subr.bf16.mxu0 0
        %242 = vmatpush1.bf16.msra.mxu0 %v232
        %243 = vmatprep.subr.bf16.mxu0 0
        %244 = vmatpush1.bf16.msra.mxu0 0
        %245 = vmatprep.subr.bf16.mxu0 0
        %246 = vmatpush1.bf16.msra.mxu0 0
        %247 = vmatprep.subr.bf16.mxu0 0
        %248 = vmatpush1.bf16.msra.mxu0 0
        %249 = vmatprep.subr.bf16.mxu0 0
        %250 = vmatpush1.bf16.msra.mxu0 0
        %251 = vmatprep.subr.bf16.mxu0 0
        %252 = vmatpush1.bf16.msra.mxu0 0
        %253 = vmatprep.subr.bf16.mxu0 0
        %254 = vmatpush1.bf16.msra.mxu0 0
        %255 = vmatprep.subr.bf16.mxu0 0
        %256 = vmatpush1.bf16.msra.mxu0 0
        %257 = vmatprep.subr.bf16.mxu0 0
        %258 = vmatpush1.bf16.msra.mxu0 0
        %259 = vmatprep.subr.bf16.mxu0 0
        %260 = vmatpush1.bf16.msra.mxu0 0
        %261 = vmatprep.subr.bf16.mxu0 0
        %262 = vmatpush1.bf16.msra.mxu0 0
        %263 = vmatprep.subr.bf16.mxu0 0
        %264 = vmatpush1.bf16.msra.mxu0 0
        %265 = vmatprep.subr.bf16.mxu0 0
        %266 = vmatpush1.bf16.msra.mxu0 0
        %267 = vmatprep.subr.bf16.mxu0 0
        %268 = vmatpush1.bf16.msra.mxu0 0
        %269 = vmatprep.subr.bf16.mxu0 0
        %270 = vmatpush1.bf16.msra.mxu0 0
        %271 = vmatprep.mubr.bf16.mxu0 0
        %272 = vmatmul.mubr.bf16.gmra.mrb[0].mxu0 %v237
        %v273 = vpop.f32.mrb[0].mxu0
        %v274 = vadd.f32 %v222, %v273
        %v275 = vpop.f32.mrb[0].mxu0
        %v276 = vpop.f32.mrb[0].mxu0
        %v277 = vpop.f32.mrb[0].mxu0
        %278 = vdwg.mxu0
        %v279 = vtanh.pop %v274
        %v280 = vpack.c.bf16 %v279, %v279
        %v281 = vld [vmem:[%s3] sm:$0xf]
        %v282 = vld [vmem:[%s3 + $0x4] sm:$0xf]
        %v283 = vld [vmem:[%s3 + $0x8] sm:$0xf]
        %v284 = vld [vmem:[%s3 + $0xc] sm:$0xf]
        %v285 = vld [vmem:[%s4] sm:$0x1]
        %v290 = vunpack.c.l.b16 %v281
        %v291 = vunpack.c.l.b16 %v282
        %v292 = vunpack.c.l.b16 %v283
        %v293 = vunpack.c.l.b16 %v284
        %v294 = vpack.c.b16 %v291, %v290
        %v295 = vpack.c.b16 %v293, %v292
        %v299 = vsel %vm235, %v280, 0
        %301 = vmatprep.subr.bf16.mxu0 0
        %302 = vmatpush1.bf16.msra.mxu0 %v294
        %303 = vmatprep.subr.bf16.mxu0 0
        %304 = vmatpush1.bf16.msra.mxu0 %v295
        %305 = vmatprep.subr.bf16.mxu0 0
        %306 = vmatpush1.bf16.msra.mxu0 0
        %307 = vmatprep.subr.bf16.mxu0 0
        %308 = vmatpush1.bf16.msra.mxu0 0
        %309 = vmatprep.subr.bf16.mxu0 0
        %310 = vmatpush1.bf16.msra.mxu0 0
        %311 = vmatprep.subr.bf16.mxu0 0
        %312 = vmatpush1.bf16.msra.mxu0 0
        %313 = vmatprep.subr.bf16.mxu0 0
        %314 = vmatpush1.bf16.msra.mxu0 0
        %315 = vmatprep.subr.bf16.mxu0 0
        %316 = vmatpush1.bf16.msra.mxu0 0
        %317 = vmatprep.subr.bf16.mxu0 0
        %318 = vmatpush1.bf16.msra.mxu0 0
        %319 = vmatprep.subr.bf16.mxu0 0
        %320 = vmatpush1.bf16.msra.mxu0 0
        %321 = vmatprep.subr.bf16.mxu0 0
        %322 = vmatpush1.bf16.msra.mxu0 0
        %323 = vmatprep.subr.bf16.mxu0 0
        %324 = vmatpush1.bf16.msra.mxu0 0
        %325 = vmatprep.subr.bf16.mxu0 0
        %326 = vmatpush1.bf16.msra.mxu0 0
        %327 = vmatprep.subr.bf16.mxu0 0
        %328 = vmatpush1.bf16.msra.mxu0 0
        %329 = vmatprep.subr.bf16.mxu0 0
        %330 = vmatpush1.bf16.msra.mxu0 0
        %331 = vmatprep.subr.bf16.mxu0 0
        %332 = vmatpush1.bf16.msra.mxu0 0
        %333 = vmatprep.mubr.bf16.mxu0 0
        %334 = vmatmul.mubr.bf16.gmra.mrb[0].mxu0 %v299
        %v335 = vpop.f32.mrb[0].mxu0
        %v336 = vadd.f32 %v285, %v335
        %v337 = vpop.f32.mrb[0].mxu0
        %v338 = vpop.f32.mrb[0].mxu0
        %v339 = vpop.f32.mrb[0].mxu0
        %340 = vdwg.mxu0
        %341 = vst [vmem:[%s212] sm:$0x1] %v336
        %s342 = sand.u32 %s137, 1
        %s343 = scalar_lea.sflag [#allocation3], %s342
        %s344 = sand.u32 %s137, 1
        %s345 = scalar_lea.vmem [#allocation2], %s344
        // Predicated region
        $region41: #{_lambda_.23} parent=39 // pred_check
          %p346 = pneg %p147
        $region42: #{_lambda_.23} parent=39 // pred_check_branch
          %348 = sbr.rel (%p346) target = $region44
        $region43: #{_lambda_.23} parent=39 // pred_region
          %s350 = ssub.s32 16, 16
          %351 = vsyncadd %s343, %s350
          %s352 = smul.addr %s19, 16
          %s353 = scalar_lea.hbm %s5, %s352
          %s355 = sshll.u32 %s345, 4
          %s356 = int_to_ptr.vmem [resolvable:$true] %s355
          %358 = dma.vmem_to_hbm [thread:$0]  %s356, 16, %s353, %s343
        $region44: #{_lambda_.23} parent=39 // pred_fallthru
          _
      $region40: #{_lambda_.23} parent=5 // pred_fallthru
        _
      %p359 = scmp.le.s32.totalorder 2, %s14
      // Predicated region
      $region45: #{_lambda_.23} parent=5 // pred_check
        %p360 = pneg %p359
      $region46: #{_lambda_.23} parent=5 // pred_check_branch
        %362 = sbr.rel (%p360) target = $region48
      $region47: #{_lambda_.23} parent=5 // pred_region
        %s363 = ssub.s32 %s14, 2
        // Predicated region
        $region49: #{_lambda_.23} parent=47 // pred_check
          %p364 = pneg %p153
        $region50: #{_lambda_.23} parent=47 // pred_check_branch
          %366 = sbr.rel (%p364) target = $region52
        $region51: #{_lambda_.23} parent=47 // pred_region
          %s367 = sand.u32 %s138, 1
          %s368 = scalar_lea.sflag [#allocation3], %s367
          %s369 = sand.u32 %s138, 1
          %s370 = scalar_lea.vmem [#allocation2], %s369
          %371 = dma.done %s368, 16
        $region52: #{_lambda_.23} parent=47 // pred_fallthru
          _
      $region48: #{_lambda_.23} parent=5 // pred_fallthru
        _
    $region6: #{_lambda_.23} parent=1 // loop_footer
      %s18 = sadd.s32 1, %s14
    $region7: #{_lambda_.23} parent=1 // loop_footer_branch
      %13 = sbr.rel target = $region3
    $region8: #{_lambda_.23} parent=1 // loop_exit
      _
    %372 = vsyncpa [#allocation3], 1
    %s373 = scalar_lea.sflag [#allocation3], 1
    %374 = vsyncpa %s373, 1

</llo_original>
